<compile_context>
chip_gen: v5e
topology: v5e:2x2
jax: 0.10.0
libtpu: 0.0.40
codegen_flags: <defaults>
</compile_context>

<pallas_src>
import functools
import math

import jax
import jax.numpy as jnp
from jax.experimental import pallas as pl
from jax.experimental.pallas import tpu as pltpu


_EPS = 1e-6


def _gelu_tanh(x):
    # PyTorch F.gelu(x, approximate='tanh')
    c = math.sqrt(2.0 / math.pi)
    return 0.5 * x * (1.0 + jnp.tanh(c * (x + 0.044715 * x * x * x)))


def _layer_norm(x, w, b, eps=_EPS):
    mu = jnp.mean(x, axis=-1, keepdims=True)
    var = jnp.mean((x - mu) ** 2, axis=-1, keepdims=True)
    return (x - mu) * jax.lax.rsqrt(var + eps) * w + b


def _split_heads(x, num_heads, head_dim):
    """(T, H*Dh) -> (H, T, Dh)."""
    t = x.shape[0]
    if head_dim % 128 == 0:
        # Lane-aligned head_dim: single layout-aware relayout (one XLU pass).
        return jnp.swapaxes(x.reshape(t, num_heads, head_dim), 0, 1)
    # TODO(synk): pad head_dim to a multiple of 128 so this masked lane-slice
    # + stack fallback is never taken on production shapes.
    return jnp.stack(
        [x[:, h * head_dim:(h + 1) * head_dim] for h in range(num_heads)],
        axis=0)


def _merge_heads(x):
    """(H, T, Dh) -> (T, H*Dh)."""
    num_heads, t, head_dim = x.shape
    if head_dim % 128 == 0:
        return jnp.swapaxes(x, 0, 1).reshape(t, num_heads * head_dim)
    return jnp.concatenate([x[h] for h in range(num_heads)], axis=-1)


def _block_kernel(
    xq_ref, xkv_ref,
    ln1w_ref, ln1b_ref,
    wq_ref, bq_ref, wk_ref, bk_ref, wv_ref, bv_ref,
    wo_ref, bo_ref,
    ln2w_ref, ln2b_ref,
    w1_ref, b1_ref, w2_ref, b2_ref,
    out_ref,
    q_sc, m_sc, l_sc, acc_sc,
    *, num_heads, head_dim,
):
    f32 = jnp.float32
    bf16 = jnp.bfloat16
    H, Dh = num_heads, head_dim

    ki = pl.program_id(2)
    n_kv = pl.num_programs(2)

    ln1_w = ln1w_ref[0]
    ln1_b = ln1b_ref[0]

    # ---- prologue: once per (batch, query-tile), at the first KV step ------
    @pl.when(ki == 0)
    def _():
        xq = xq_ref[0].astype(f32)                                  # (TQ, D)
        xq_n = _layer_norm(xq, ln1_w, ln1_b).astype(bf16)
        # 1/sqrt(head_dim) is folded into wq / bq by the wrapper.
        q = jnp.dot(xq_n, wq_ref[...], preferred_element_type=f32) + bq_ref[0]
        q_sc[...] = _split_heads(q, H, Dh).astype(bf16)             # (H, TQ, Dh)
        m_sc[...] = jnp.full(m_sc.shape, -jnp.inf, f32)
        l_sc[...] = jnp.zeros(l_sc.shape, f32)
        acc_sc[...] = jnp.zeros(acc_sc.shape, f32)

    # ---- per-KV-tile: LayerNorm1 + K/V projection for this tile only -------
    xkv_n = _layer_norm(xkv_ref[0].astype(f32), ln1_w, ln1_b).astype(bf16)
    k = jnp.dot(xkv_n, wk_ref[...], preferred_element_type=f32) + bk_ref[0]
    v = jnp.dot(xkv_n, wv_ref[...], preferred_element_type=f32) + bv_ref[0]
    kh = _split_heads(k, H, Dh).astype(bf16)                        # (H, TK, Dh)
    vh = _split_heads(v, H, Dh).astype(bf16)

    # ---- online softmax (flash) update, batched over heads -----------------
    s = jnp.einsum("hqd,hkd->hqk", q_sc[...], kh,
                   preferred_element_type=f32)                      # (H, TQ, TK)
    m_prev = m_sc[...]
    m_new = jnp.maximum(m_prev, jnp.max(s, axis=-1, keepdims=True))
    alpha = jnp.exp(m_prev - m_new)
    p = jnp.exp(s - m_new)                                          # unnormalized
    l_sc[...] = alpha * l_sc[...] + jnp.sum(p, axis=-1, keepdims=True)
    acc_sc[...] = alpha * acc_sc[...] + jnp.einsum(
        "hqk,hkd->hqd", p.astype(bf16), vh, preferred_element_type=f32)
    m_sc[...] = m_new

    # ---- epilogue: last KV step — normalize, out-proj, residuals, FF -------
    @pl.when(ki == n_kv - 1)
    def _():
        # Normalize once after the PV matmuls (H*TQ*Dh multiplies instead of
        # H*TQ*S); the reciprocal runs on the EUP slot.
        inv_l = pl.reciprocal(l_sc[...], approx=True)               # (H, TQ, 1)
        attn = _merge_heads(acc_sc[...] * inv_l).astype(bf16)       # (TQ, H*Dh)

        # to_out[0]; to_out[1] is Dropout == identity at inference.
        attn_out = jnp.dot(attn, wo_ref[...],
                           preferred_element_type=f32) + bo_ref[0]

        x_res = xq_ref[0].astype(f32) + attn_out                    # residual 1

        xn2 = _layer_norm(x_res, ln2w_ref[0], ln2b_ref[0]).astype(bf16)
        # TODO(synk): tile the FF 4*D hidden axis for very large D so w1/w2
        # need not be fully co-resident with the attention working set.
        h1 = jnp.dot(xn2, w1_ref[...], preferred_element_type=f32) + b1_ref[0]
        g = _gelu_tanh(h1).astype(bf16)
        ff = jnp.dot(g, w2_ref[...], preferred_element_type=f32) + b2_ref[0]

        out_ref[0] = (x_res + ff).astype(out_ref.dtype)             # residual 2


def _largest_divisor(n, cap):
    t = max(1, min(n, cap))
    while n % t != 0:
        t -= 1
    return t


def _act_vmem_bytes(q_tile, kv_tile, d, num_heads, head_dim):
    """Rough per-step activation / buffer footprint (bytes)."""
    inner = num_heads * head_dim
    ffd = 4 * d
    b = 0
    b += 2 * kv_tile * d * 4                      # streamed KV x-tile (2 bufs, f32)
    b += 2 * q_tile * d * 4                       # query x-tile (2 bufs, f32)
    b += 2 * q_tile * d * 4                       # output tile (2 bufs)
    b += num_heads * q_tile * (head_dim * 6 + 8)  # q_sc (bf16) + acc/m/l (f32)
    b += num_heads * q_tile * kv_tile * 6         # scores f32 + probs bf16
    b += kv_tile * inner * 12                     # k, v (f32 + bf16)
    b += q_tile * ffd * 6                         # FF hidden (f32 + bf16)
    b += q_tile * (inner + d) * 12                # misc per-row temporaries
    return b


def _choose_tiles(seq, d, num_heads, head_dim, weight_bytes, vmem_cap):
    budget = int(vmem_cap * 0.85) - weight_bytes
    kv_tile = _largest_divisor(seq, 512)
    for q_target in (512, 256, 128, 64, 32, 16, 8):
        q_tile = _largest_divisor(seq, q_target)
        if _act_vmem_bytes(q_tile, kv_tile, d, num_heads, head_dim) <= budget:
            return q_tile, kv_tile
    # TODO(synk): pad/mask ragged sequences and tile the FF hidden axis
    # instead of falling back to the smallest tiles here.
    return _largest_divisor(seq, 8), _largest_divisor(seq, 128)


def temporal_transformer_block(x, params, *, num_heads, head_dim,
                               q_tile=None, kv_tile=None):
    """x: (B, S, D) float32.  params: dict of f32 weights (see init_params)."""
    B, S, D = x.shape
    f32, bf16 = jnp.float32, jnp.bfloat16

    # Matmul weights streamed as bf16 (MXU-native, half the VMEM); LayerNorm
    # params and biases stay f32.  Attention scale 1/sqrt(head_dim) is folded
    # into wq / bq here (one-time constant prep, zero runtime cost).
    scale = 1.0 / math.sqrt(head_dim)
    weights = [
        params["ln1_w"].astype(f32), params["ln1_b"].astype(f32),
        (params["wq"] * scale).astype(bf16), (params["bq"] * scale).astype(f32),
        params["wk"].astype(bf16), params["bk"].astype(f32),
        params["wv"].astype(bf16), params["bv"].astype(f32),
        params["wo"].astype(bf16), params["bo"].astype(f32),
        params["ln2_w"].astype(f32), params["ln2_b"].astype(f32),
        params["w1"].astype(bf16), params["b1"].astype(f32),
        params["w2"].astype(bf16), params["b2"].astype(f32),
    ]
    weight_bytes = sum(int(w.size) * w.dtype.itemsize for w in weights)

    # Generation-aware sizing (v7x has 64 MiB VMEM/TC vs 128 MiB on v5e/v6e).
    try:
        vmem_cap = int(pltpu.get_tpu_info().vmem_capacity_bytes)
    except Exception:
        vmem_cap = 64 * 1024 * 1024   # conservative fallback

    auto_q, auto_kv = _choose_tiles(S, D, num_heads, head_dim,
                                    weight_bytes, vmem_cap)
    q_tile = q_tile or auto_q
    kv_tile = kv_tile or auto_kv
    n_q, n_kv = S // q_tile, S // kv_tile

    act_bytes = _act_vmem_bytes(q_tile, kv_tile, D, num_heads, head_dim)
    vmem_limit = min(int(vmem_cap * 0.9),
                     max(32 * 1024 * 1024, 2 * (weight_bytes + act_bytes)))

    def const_spec(arr):
        # Constant block index => weight stays resident across the whole grid;
        # Buffered(1) avoids allocating a useless second copy of each weight.
        nd = arr.ndim
        return pl.BlockSpec(arr.shape, lambda b, qi, ki, _nd=nd: (0,) * _nd,
                            pipeline_mode=pl.Buffered(1))

    in_specs = [
        # Query tile (also the residual).  Its block index is constant along
        # the KV axis, so it is DMA'd once per (batch, query-tile).
        pl.BlockSpec((1, q_tile, D), lambda b, qi, ki: (b, qi, 0)),
        # Streamed KV tile of the same sequence (double-buffered for overlap).
        pl.BlockSpec((1, kv_tile, D), lambda b, qi, ki: (b, ki, 0)),
    ] + [const_spec(w) for w in weights]

    kernel = functools.partial(_block_kernel,
                               num_heads=num_heads, head_dim=head_dim)

    return pl.pallas_call(
        kernel,
        out_shape=jax.ShapeDtypeStruct((B, S, D), x.dtype),
        grid_spec=pltpu.PrefetchScalarGridSpec(
            num_scalar_prefetch=0,
            grid=(B, n_q, n_kv),
            in_specs=in_specs,
            out_specs=pl.BlockSpec((1, q_tile, D), lambda b, qi, ki: (b, qi, 0)),
            scratch_shapes=[
                pltpu.VMEM((num_heads, q_tile, head_dim), jnp.bfloat16),  # q
                pltpu.VMEM((num_heads, q_tile, 1), jnp.float32),          # m
                pltpu.VMEM((num_heads, q_tile, 1), jnp.float32),          # l
                pltpu.VMEM((num_heads, q_tile, head_dim), jnp.float32),   # acc
            ]),
        compiler_params=pltpu.CompilerParams(
            dimension_semantics=("parallel", "parallel", "arbitrary"),
            vmem_limit_bytes=vmem_limit),
    )(x, x, *weights)


def init_params(key, dim, num_heads, head_dim):
    """Deterministic synthetic parameters matching the PyTorch module shapes.

    Linear weights are stored pre-transposed as (in, out) (PyTorch stores
    (out, in) and computes x @ W.T); biases are stored as (1, out).
    """
    inner = num_heads * head_dim
    ff_inner = dim * 4
    keys = jax.random.split(key, 6)

    def lin(k, din, dout):
        kw, kb = jax.random.split(k)
        s = 1.0 / math.sqrt(din)
        w = jax.random.uniform(kw, (din, dout), jnp.float32, -s, s)
        b = jax.random.uniform(kb, (1, dout), jnp.float32, -s, s)
        return w, b

    wq, bq = lin(keys[0], dim, inner)
    wk, bk = lin(keys[1], dim, inner)
    wv, bv = lin(keys[2], dim, inner)
    wo, bo = lin(keys[3], inner, dim)
    w1, b1 = lin(keys[4], dim, ff_inner)
    w2, b2 = lin(keys[5], ff_inner, dim)

    return {
        "ln1_w": jnp.ones((1, dim), jnp.float32),
        "ln1_b": jnp.zeros((1, dim), jnp.float32),
        "wq": wq, "bq": bq, "wk": wk, "bk": bk, "wv": wv, "bv": bv,
        "wo": wo, "bo": bo,
        "ln2_w": jnp.ones((1, dim), jnp.float32),
        "ln2_b": jnp.zeros((1, dim), jnp.float32),
        "w1": w1, "b1": b1, "w2": w2, "b2": b2,
    }


def reference_block(x, p, *, num_heads, head_dim):
    """Pure-JAX f32 reference reproducing the PyTorch forward exactly."""
    eps = 1e-6
    B, S, D = x.shape

    def ln(h, w, b):
        mu = jnp.mean(h, axis=-1, keepdims=True)
        var = jnp.mean((h - mu) ** 2, axis=-1, keepdims=True)
        return (h - mu) / jnp.sqrt(var + eps) * w + b

    xn = ln(x, p["ln1_w"][0], p["ln1_b"][0])
    q = xn @ p["wq"] + p["bq"][0]
    k = xn @ p["wk"] + p["bk"][0]
    v = xn @ p["wv"] + p["bv"][0]
    q = q.reshape(B, S, num_heads, head_dim).transpose(0, 2, 1, 3)
    k = k.reshape(B, S, num_heads, head_dim).transpose(0, 2, 1, 3)
    v = v.reshape(B, S, num_heads, head_dim).transpose(0, 2, 1, 3)
    s = jnp.einsum("bhqd,bhkd->bhqk", q, k) / math.sqrt(head_dim)
    a = jax.nn.softmax(s, axis=-1)
    o = jnp.einsum("bhqk,bhkd->bhqd", a, v)
    o = o.transpose(0, 2, 1, 3).reshape(B, S, num_heads * head_dim)
    attn_out = o @ p["wo"] + p["bo"][0]
    x = x + attn_out
    xn2 = ln(x, p["ln2_w"][0], p["ln2_b"][0])
    h1 = xn2 @ p["w1"] + p["b1"][0]
    g = _gelu_tanh(h1)
    ff = g @ p["w2"] + p["b2"][0]
    return x + ff


if __name__ == "__main__":
    dim = 32
    num_heads = 2
    head_dim = 16
    batch = 2
    seq = 8

    key = jax.random.PRNGKey(0)
    kx, kp = jax.random.split(key)
    x = jax.random.normal(kx, (batch, seq, dim), jnp.float32)
    params = init_params(kp, dim, num_heads, head_dim)

    out = temporal_transformer_block(x, params,
                                     num_heads=num_heads, head_dim=head_dim)
    out = jax.block_until_ready(out)

    ref = reference_block(x, params, num_heads=num_heads, head_dim=head_dim)
    assert out.shape == (batch, seq, dim)
    max_err = float(jnp.max(jnp.abs(out - ref)))
    # Kernel runs its matmuls in bf16 (f32 accumulation) and uses an EUP
    # approximate reciprocal in the softmax; compare against the pure-f32
    # reference with a mixed-precision tolerance.
    assert jnp.allclose(out, ref, atol=5e-2, rtol=5e-2), (
        f"mismatch vs reference, max abs err {max_err}")

    print("KERNEL_OK")
</pallas_src>

<mosaic_0001>
module attributes {stable_mosaic.version = 11 : i64} {
  func.func @_block_kernel(%arg0: i32, %arg1: i32, %arg2: i32, %arg3: memref<1x8x32xf32, #tpu.memory_space<vmem>>, %arg4: memref<1x8x32xf32, #tpu.memory_space<vmem>>, %arg5: memref<1x32xf32, #tpu.memory_space<vmem>>, %arg6: memref<1x32xf32, #tpu.memory_space<vmem>>, %arg7: memref<32x32xbf16, #tpu.memory_space<vmem>>, %arg8: memref<1x32xf32, #tpu.memory_space<vmem>>, %arg9: memref<32x32xbf16, #tpu.memory_space<vmem>>, %arg10: memref<1x32xf32, #tpu.memory_space<vmem>>, %arg11: memref<32x32xbf16, #tpu.memory_space<vmem>>, %arg12: memref<1x32xf32, #tpu.memory_space<vmem>>, %arg13: memref<32x32xbf16, #tpu.memory_space<vmem>>, %arg14: memref<1x32xf32, #tpu.memory_space<vmem>>, %arg15: memref<1x32xf32, #tpu.memory_space<vmem>>, %arg16: memref<1x32xf32, #tpu.memory_space<vmem>>, %arg17: memref<32x128xbf16, #tpu.memory_space<vmem>>, %arg18: memref<1x128xf32, #tpu.memory_space<vmem>>, %arg19: memref<128x32xbf16, #tpu.memory_space<vmem>>, %arg20: memref<1x32xf32, #tpu.memory_space<vmem>>, %arg21: memref<1x8x32xf32, #tpu.memory_space<vmem>>, %arg22: memref<2x8x16xbf16, #tpu.memory_space<vmem>>, %arg23: memref<2x8x1xf32, #tpu.memory_space<vmem>>, %arg24: memref<2x8x1xf32, #tpu.memory_space<vmem>>, %arg25: memref<2x8x16xf32, #tpu.memory_space<vmem>>) attributes {dimension_semantics = [#tpu.dimension_semantics<parallel>, #tpu.dimension_semantics<parallel>, #tpu.dimension_semantics<arbitrary>], iteration_bounds = array<i64: 2, 1, 1>, scalar_prefetch = 0 : i64, scratch_operands = 4 : i64, tpu.core_type = #tpu.core_type<tc>, window_params = [{transform_indices = @transform_0, window_bounds = array<i64: 1, 8, 32>}, {transform_indices = @transform_1, window_bounds = array<i64: 1, 8, 32>}, {pipeline_mode = #tpu.pipeline_mode<synchronous>, transform_indices = @transform_2, window_bounds = array<i64: 1, 32>}, {pipeline_mode = #tpu.pipeline_mode<synchronous>, transform_indices = @transform_3, window_bounds = array<i64: 1, 32>}, {pipeline_mode = #tpu.pipeline_mode<synchronous>, transform_indices = @transform_4, window_bounds = array<i64: 32, 32>}, {pipeline_mode = #tpu.pipeline_mode<synchronous>, transform_indices = @transform_5, window_bounds = array<i64: 1, 32>}, {pipeline_mode = #tpu.pipeline_mode<synchronous>, transform_indices = @transform_6, window_bounds = array<i64: 32, 32>}, {pipeline_mode = #tpu.pipeline_mode<synchronous>, transform_indices = @transform_7, window_bounds = array<i64: 1, 32>}, {pipeline_mode = #tpu.pipeline_mode<synchronous>, transform_indices = @transform_8, window_bounds = array<i64: 32, 32>}, {pipeline_mode = #tpu.pipeline_mode<synchronous>, transform_indices = @transform_9, window_bounds = array<i64: 1, 32>}, {pipeline_mode = #tpu.pipeline_mode<synchronous>, transform_indices = @transform_10, window_bounds = array<i64: 32, 32>}, {pipeline_mode = #tpu.pipeline_mode<synchronous>, transform_indices = @transform_11, window_bounds = array<i64: 1, 32>}, {pipeline_mode = #tpu.pipeline_mode<synchronous>, transform_indices = @transform_12, window_bounds = array<i64: 1, 32>}, {pipeline_mode = #tpu.pipeline_mode<synchronous>, transform_indices = @transform_13, window_bounds = array<i64: 1, 32>}, {pipeline_mode = #tpu.pipeline_mode<synchronous>, transform_indices = @transform_14, window_bounds = array<i64: 32, 128>}, {pipeline_mode = #tpu.pipeline_mode<synchronous>, transform_indices = @transform_15, window_bounds = array<i64: 1, 128>}, {pipeline_mode = #tpu.pipeline_mode<synchronous>, transform_indices = @transform_16, window_bounds = array<i64: 128, 32>}, {pipeline_mode = #tpu.pipeline_mode<synchronous>, transform_indices = @transform_17, window_bounds = array<i64: 1, 32>}, {transform_indices = @transform_18, window_bounds = array<i64: 1, 8, 32>}]} {
    %c0 = arith.constant 0 : index
    %c0_0 = arith.constant 0 : index
    %0 = vector.load %arg5[%c0, %c0_0] : memref<1x32xf32, #tpu.memory_space<vmem>>, vector<1x32xf32>
    %1 = vector.shape_cast %0 : vector<1x32xf32> to vector<32xf32>
    %c0_1 = arith.constant 0 : index
    %c0_2 = arith.constant 0 : index
    %2 = vector.load %arg6[%c0_1, %c0_2] : memref<1x32xf32, #tpu.memory_space<vmem>>, vector<1x32xf32>
    %3 = vector.shape_cast %2 : vector<1x32xf32> to vector<32xf32>
    %c0_i32 = arith.constant 0 : i32
    %4 = arith.cmpi eq, %arg2, %c0_i32 : i32
    %5 = arith.extui %4 : i1 to i32
    %c0_i32_3 = arith.constant 0 : i32
    %6 = arith.cmpi ne, %5, %c0_i32_3 : i32
    scf.if %6 {
      %c0_48 = arith.constant 0 : index
      %c0_49 = arith.constant 0 : index
      %c0_50 = arith.constant 0 : index
      %88 = vector.load %arg3[%c0_48, %c0_49, %c0_50] : memref<1x8x32xf32, #tpu.memory_space<vmem>>, vector<1x8x32xf32>
      %89 = vector.shape_cast %88 : vector<1x8x32xf32> to vector<8x32xf32>
      %cst_51 = arith.constant dense<0.000000e+00> : vector<8xf32>
      %90 = vector.multi_reduction <add>, %89, %cst_51 [1] : vector<8x32xf32> to vector<8xf32>
      %91 = vector.shape_cast %90 : vector<8xf32> to vector<8x1xf32>
      %cst_52 = arith.constant 3.200000e+01 : f32
      %92 = vector.broadcast %cst_52 : f32 to vector<8x1xf32>
      %93 = arith.divf %91, %92 : vector<8x1xf32>
      %94 = vector.broadcast %93 : vector<8x1xf32> to vector<8x32xf32>
      %95 = arith.subf %89, %94 : vector<8x32xf32>
      %96 = arith.mulf %95, %95 : vector<8x32xf32>
      %cst_53 = arith.constant dense<0.000000e+00> : vector<8xf32>
      %97 = vector.multi_reduction <add>, %96, %cst_53 [1] : vector<8x32xf32> to vector<8xf32>
      %98 = vector.shape_cast %97 : vector<8xf32> to vector<8x1xf32>
      %cst_54 = arith.constant 3.200000e+01 : f32
      %99 = vector.broadcast %cst_54 : f32 to vector<8x1xf32>
      %100 = arith.divf %98, %99 : vector<8x1xf32>
      %101 = vector.broadcast %93 : vector<8x1xf32> to vector<8x32xf32>
      %102 = arith.subf %89, %101 : vector<8x32xf32>
      %cst_55 = arith.constant 9.99999997E-7 : f32
      %103 = vector.broadcast %cst_55 : f32 to vector<8x1xf32>
      %104 = arith.addf %100, %103 : vector<8x1xf32>
      %105 = math.rsqrt %104 : vector<8x1xf32>
      %106 = vector.broadcast %105 : vector<8x1xf32> to vector<8x32xf32>
      %107 = arith.mulf %102, %106 : vector<8x32xf32>
      %108 = vector.shape_cast %1 : vector<32xf32> to vector<1x32xf32>
      %109 = vector.broadcast %108 : vector<1x32xf32> to vector<8x32xf32>
      %110 = arith.mulf %107, %109 : vector<8x32xf32>
      %111 = vector.shape_cast %3 : vector<32xf32> to vector<1x32xf32>
      %112 = vector.broadcast %111 : vector<1x32xf32> to vector<8x32xf32>
      %113 = arith.addf %110, %112 : vector<8x32xf32>
      %114 = arith.truncf %113 : vector<8x32xf32> to vector<8x32xbf16>
      %c0_56 = arith.constant 0 : index
      %c0_57 = arith.constant 0 : index
      %115 = vector.load %arg7[%c0_56, %c0_57] : memref<32x32xbf16, #tpu.memory_space<vmem>>, vector<32x32xbf16>
      %cst_58 = arith.constant dense<0.000000e+00> : vector<8x32xf32>
      %116 = tpu.matmul %114, %115, %cst_58 {dimension_numbers = #tpu.dot_dimension_numbers<[1], [0], [0], [1], [0, 0, 1, 1], [], []>} : vector<8x32xbf16>, vector<32x32xbf16>, vector<8x32xf32> -> vector<8x32xf32>
      %c0_59 = arith.constant 0 : index
      %c0_60 = arith.constant 0 : index
      %117 = vector.load %arg8[%c0_59, %c0_60] : memref<1x32xf32, #tpu.memory_space<vmem>>, vector<1x32xf32>
      %118 = vector.shape_cast %117 : vector<1x32xf32> to vector<32xf32>
      %119 = vector.shape_cast %118 : vector<32xf32> to vector<1x32xf32>
      %120 = vector.broadcast %119 : vector<1x32xf32> to vector<8x32xf32>
      %121 = arith.addf %116, %120 : vector<8x32xf32>
      %122 = vector.extract_strided_slice %121 {offsets = [0, 0], sizes = [8, 16], strides = [1, 1]} : vector<8x32xf32> to vector<8x16xf32>
      %123 = vector.extract_strided_slice %121 {offsets = [0, 16], sizes = [8, 16], strides = [1, 1]} : vector<8x32xf32> to vector<8x16xf32>
      %124 = vector.shape_cast %122 : vector<8x16xf32> to vector<1x8x16xf32>
      %125 = vector.shape_cast %123 : vector<8x16xf32> to vector<1x8x16xf32>
      %126 = tpu.concatenate %124, %125 in 0 : vector<1x8x16xf32>, vector<1x8x16xf32> -> vector<2x8x16xf32>
      %127 = arith.truncf %126 : vector<2x8x16xf32> to vector<2x8x16xbf16>
      %c0_61 = arith.constant 0 : index
      %c0_62 = arith.constant 0 : index
      %c0_63 = arith.constant 0 : index
      %128 = vector.load %arg22[%c0_61, %c0_62, %c0_63] : memref<2x8x16xbf16, #tpu.memory_space<vmem>>, vector<2x8x16xbf16>
      tpu.vector_store %arg22[%c0_61, %c0_62, %c0_63], %127 {strides = array<i32>} : memref<2x8x16xbf16, #tpu.memory_space<vmem>>, vector<2x8x16xbf16>,
      %cst_64 = arith.constant 0xFF800000 : f32
      %129 = vector.broadcast %cst_64 : f32 to vector<2x8x1xf32>
      %c0_65 = arith.constant 0 : index
      %c0_66 = arith.constant 0 : index
      %c0_67 = arith.constant 0 : index
      %130 = vector.load %arg23[%c0_65, %c0_66, %c0_67] : memref<2x8x1xf32, #tpu.memory_space<vmem>>, vector<2x8x1xf32>
      tpu.vector_store %arg23[%c0_65, %c0_66, %c0_67], %129 {strides = array<i32>} : memref<2x8x1xf32, #tpu.memory_space<vmem>>, vector<2x8x1xf32>,
      %cst_68 = arith.constant 0.000000e+00 : f32
      %131 = vector.broadcast %cst_68 : f32 to vector<2x8x1xf32>
      %c0_69 = arith.constant 0 : index
      %c0_70 = arith.constant 0 : index
      %c0_71 = arith.constant 0 : index
      %132 = vector.load %arg24[%c0_69, %c0_70, %c0_71] : memref<2x8x1xf32, #tpu.memory_space<vmem>>, vector<2x8x1xf32>
      tpu.vector_store %arg24[%c0_69, %c0_70, %c0_71], %131 {strides = array<i32>} : memref<2x8x1xf32, #tpu.memory_space<vmem>>, vector<2x8x1xf32>,
      %cst_72 = arith.constant 0.000000e+00 : f32
      %133 = vector.broadcast %cst_72 : f32 to vector<2x8x16xf32>
      %c0_73 = arith.constant 0 : index
      %c0_74 = arith.constant 0 : index
      %c0_75 = arith.constant 0 : index
      %134 = vector.load %arg25[%c0_73, %c0_74, %c0_75] : memref<2x8x16xf32, #tpu.memory_space<vmem>>, vector<2x8x16xf32>
      tpu.vector_store %arg25[%c0_73, %c0_74, %c0_75], %133 {strides = array<i32>} : memref<2x8x16xf32, #tpu.memory_space<vmem>>, vector<2x8x16xf32>,
    } else {
    }
    %c0_4 = arith.constant 0 : index
    %c0_5 = arith.constant 0 : index
    %c0_6 = arith.constant 0 : index
    %7 = vector.load %arg4[%c0_4, %c0_5, %c0_6] : memref<1x8x32xf32, #tpu.memory_space<vmem>>, vector<1x8x32xf32>
    %8 = vector.shape_cast %7 : vector<1x8x32xf32> to vector<8x32xf32>
    %cst = arith.constant dense<0.000000e+00> : vector<8xf32>
    %9 = vector.multi_reduction <add>, %8, %cst [1] : vector<8x32xf32> to vector<8xf32>
    %10 = vector.shape_cast %9 : vector<8xf32> to vector<8x1xf32>
    %cst_7 = arith.constant 3.200000e+01 : f32
    %11 = vector.broadcast %cst_7 : f32 to vector<8x1xf32>
    %12 = arith.divf %10, %11 : vector<8x1xf32>
    %13 = vector.broadcast %12 : vector<8x1xf32> to vector<8x32xf32>
    %14 = arith.subf %8, %13 : vector<8x32xf32>
    %15 = arith.mulf %14, %14 : vector<8x32xf32>
    %cst_8 = arith.constant dense<0.000000e+00> : vector<8xf32>
    %16 = vector.multi_reduction <add>, %15, %cst_8 [1] : vector<8x32xf32> to vector<8xf32>
    %17 = vector.shape_cast %16 : vector<8xf32> to vector<8x1xf32>
    %cst_9 = arith.constant 3.200000e+01 : f32
    %18 = vector.broadcast %cst_9 : f32 to vector<8x1xf32>
    %19 = arith.divf %17, %18 : vector<8x1xf32>
    %20 = vector.broadcast %12 : vector<8x1xf32> to vector<8x32xf32>
    %21 = arith.subf %8, %20 : vector<8x32xf32>
    %cst_10 = arith.constant 9.99999997E-7 : f32
    %22 = vector.broadcast %cst_10 : f32 to vector<8x1xf32>
    %23 = arith.addf %19, %22 : vector<8x1xf32>
    %24 = math.rsqrt %23 : vector<8x1xf32>
    %25 = vector.broadcast %24 : vector<8x1xf32> to vector<8x32xf32>
    %26 = arith.mulf %21, %25 : vector<8x32xf32>
    %27 = vector.shape_cast %1 : vector<32xf32> to vector<1x32xf32>
    %28 = vector.broadcast %27 : vector<1x32xf32> to vector<8x32xf32>
    %29 = arith.mulf %26, %28 : vector<8x32xf32>
    %30 = vector.shape_cast %3 : vector<32xf32> to vector<1x32xf32>
    %31 = vector.broadcast %30 : vector<1x32xf32> to vector<8x32xf32>
    %32 = arith.addf %29, %31 : vector<8x32xf32>
    %33 = arith.truncf %32 : vector<8x32xf32> to vector<8x32xbf16>
    %c0_11 = arith.constant 0 : index
    %c0_12 = arith.constant 0 : index
    %34 = vector.load %arg9[%c0_11, %c0_12] : memref<32x32xbf16, #tpu.memory_space<vmem>>, vector<32x32xbf16>
    %cst_13 = arith.constant dense<0.000000e+00> : vector<8x32xf32>
    %35 = tpu.matmul %33, %34, %cst_13 {dimension_numbers = #tpu.dot_dimension_numbers<[1], [0], [0], [1], [0, 0, 1, 1], [], []>} : vector<8x32xbf16>, vector<32x32xbf16>, vector<8x32xf32> -> vector<8x32xf32>
    %c0_14 = arith.constant 0 : index
    %c0_15 = arith.constant 0 : index
    %36 = vector.load %arg10[%c0_14, %c0_15] : memref<1x32xf32, #tpu.memory_space<vmem>>, vector<1x32xf32>
    %37 = vector.shape_cast %36 : vector<1x32xf32> to vector<32xf32>
    %38 = vector.shape_cast %37 : vector<32xf32> to vector<1x32xf32>
    %39 = vector.broadcast %38 : vector<1x32xf32> to vector<8x32xf32>
    %40 = arith.addf %35, %39 : vector<8x32xf32>
    %c0_16 = arith.constant 0 : index
    %c0_17 = arith.constant 0 : index
    %41 = vector.load %arg11[%c0_16, %c0_17] : memref<32x32xbf16, #tpu.memory_space<vmem>>, vector<32x32xbf16>
    %cst_18 = arith.constant dense<0.000000e+00> : vector<8x32xf32>
    %42 = tpu.matmul %33, %41, %cst_18 {dimension_numbers = #tpu.dot_dimension_numbers<[1], [0], [0], [1], [0, 0, 1, 1], [], []>} : vector<8x32xbf16>, vector<32x32xbf16>, vector<8x32xf32> -> vector<8x32xf32>
    %c0_19 = arith.constant 0 : index
    %c0_20 = arith.constant 0 : index
    %43 = vector.load %arg12[%c0_19, %c0_20] : memref<1x32xf32, #tpu.memory_space<vmem>>, vector<1x32xf32>
    %44 = vector.shape_cast %43 : vector<1x32xf32> to vector<32xf32>
    %45 = vector.shape_cast %44 : vector<32xf32> to vector<1x32xf32>
    %46 = vector.broadcast %45 : vector<1x32xf32> to vector<8x32xf32>
    %47 = arith.addf %42, %46 : vector<8x32xf32>
    %48 = vector.extract_strided_slice %40 {offsets = [0, 0], sizes = [8, 16], strides = [1, 1]} : vector<8x32xf32> to vector<8x16xf32>
    %49 = vector.extract_strided_slice %40 {offsets = [0, 16], sizes = [8, 16], strides = [1, 1]} : vector<8x32xf32> to vector<8x16xf32>
    %50 = vector.shape_cast %48 : vector<8x16xf32> to vector<1x8x16xf32>
    %51 = vector.shape_cast %49 : vector<8x16xf32> to vector<1x8x16xf32>
    %52 = tpu.concatenate %50, %51 in 0 : vector<1x8x16xf32>, vector<1x8x16xf32> -> vector<2x8x16xf32>
    %53 = arith.truncf %52 : vector<2x8x16xf32> to vector<2x8x16xbf16>
    %54 = vector.extract_strided_slice %47 {offsets = [0, 0], sizes = [8, 16], strides = [1, 1]} : vector<8x32xf32> to vector<8x16xf32>
    %55 = vector.extract_strided_slice %47 {offsets = [0, 16], sizes = [8, 16], strides = [1, 1]} : vector<8x32xf32> to vector<8x16xf32>
    %56 = vector.shape_cast %54 : vector<8x16xf32> to vector<1x8x16xf32>
    %57 = vector.shape_cast %55 : vector<8x16xf32> to vector<1x8x16xf32>
    %58 = tpu.concatenate %56, %57 in 0 : vector<1x8x16xf32>, vector<1x8x16xf32> -> vector<2x8x16xf32>
    %59 = arith.truncf %58 : vector<2x8x16xf32> to vector<2x8x16xbf16>
    %c0_21 = arith.constant 0 : index
    %c0_22 = arith.constant 0 : index
    %c0_23 = arith.constant 0 : index
    %60 = vector.load %arg22[%c0_21, %c0_22, %c0_23] : memref<2x8x16xbf16, #tpu.memory_space<vmem>>, vector<2x8x16xbf16>
    "tpu.trace_start"() <{level = 10 : i32, message = "hqd,hkd->hqk"}> : () -> ()
    %cst_24 = arith.constant dense<0.000000e+00> : vector<2x8x8xf32>
    %61 = tpu.matmul %60, %53, %cst_24 {dimension_numbers = #tpu.dot_dimension_numbers<[2], [2], [1], [1], [0, 0, 0, 1, 1, 1], [0], [0]>} : vector<2x8x16xbf16>, vector<2x8x16xbf16>, vector<2x8x8xf32> -> vector<2x8x8xf32>
    "tpu.trace_stop"() : () -> ()
    %c0_25 = arith.constant 0 : index
    %c0_26 = arith.constant 0 : index
    %c0_27 = arith.constant 0 : index
    %62 = vector.load %arg23[%c0_25, %c0_26, %c0_27] : memref<2x8x1xf32, #tpu.memory_space<vmem>>, vector<2x8x1xf32>
    %cst_28 = arith.constant dense<0xFF800000> : vector<2x8xf32>
    %63 = vector.multi_reduction <maximumf>, %61, %cst_28 [2] : vector<2x8x8xf32> to vector<2x8xf32>
    %64 = vector.shape_cast %63 : vector<2x8xf32> to vector<2x8x1xf32>
    %65 = arith.maximumf %62, %64 : vector<2x8x1xf32>
    %66 = arith.subf %62, %65 : vector<2x8x1xf32>
    %67 = math.exp %66 : vector<2x8x1xf32>
    %68 = vector.broadcast %65 : vector<2x8x1xf32> to vector<2x8x8xf32>
    %69 = arith.subf %61, %68 : vector<2x8x8xf32>
    %70 = math.exp %69 : vector<2x8x8xf32>
    %c0_29 = arith.constant 0 : index
    %c0_30 = arith.constant 0 : index
    %c0_31 = arith.constant 0 : index
    %71 = vector.load %arg24[%c0_29, %c0_30, %c0_31] : memref<2x8x1xf32, #tpu.memory_space<vmem>>, vector<2x8x1xf32>
    %72 = arith.mulf %67, %71 : vector<2x8x1xf32>
    %cst_32 = arith.constant dense<0.000000e+00> : vector<2x8xf32>
    %73 = vector.multi_reduction <add>, %70, %cst_32 [2] : vector<2x8x8xf32> to vector<2x8xf32>
    %74 = vector.shape_cast %73 : vector<2x8xf32> to vector<2x8x1xf32>
    %75 = arith.addf %72, %74 : vector<2x8x1xf32>
    %c0_33 = arith.constant 0 : index
    %c0_34 = arith.constant 0 : index
    %c0_35 = arith.constant 0 : index
    %76 = vector.load %arg24[%c0_33, %c0_34, %c0_35] : memref<2x8x1xf32, #tpu.memory_space<vmem>>, vector<2x8x1xf32>
    tpu.vector_store %arg24[%c0_33, %c0_34, %c0_35], %75 {strides = array<i32>} : memref<2x8x1xf32, #tpu.memory_space<vmem>>, vector<2x8x1xf32>,
    %c0_36 = arith.constant 0 : index
    %c0_37 = arith.constant 0 : index
    %c0_38 = arith.constant 0 : index
    %77 = vector.load %arg25[%c0_36, %c0_37, %c0_38] : memref<2x8x16xf32, #tpu.memory_space<vmem>>, vector<2x8x16xf32>
    %78 = vector.broadcast %67 : vector<2x8x1xf32> to vector<2x8x16xf32>
    %79 = arith.mulf %78, %77 : vector<2x8x16xf32>
    %80 = arith.truncf %70 : vector<2x8x8xf32> to vector<2x8x8xbf16>
    "tpu.trace_start"() <{level = 10 : i32, message = "hqk,hkd->hqd"}> : () -> ()
    %cst_39 = arith.constant dense<0.000000e+00> : vector<2x8x16xf32>
    %81 = tpu.matmul %80, %59, %cst_39 {dimension_numbers = #tpu.dot_dimension_numbers<[2], [1], [1], [2], [0, 0, 0, 1, 1, 2], [0], [0]>} : vector<2x8x8xbf16>, vector<2x8x16xbf16>, vector<2x8x16xf32> -> vector<2x8x16xf32>
    "tpu.trace_stop"() : () -> ()
    %82 = arith.addf %79, %81 : vector<2x8x16xf32>
    %c0_40 = arith.constant 0 : index
    %c0_41 = arith.constant 0 : index
    %c0_42 = arith.constant 0 : index
    %83 = vector.load %arg25[%c0_40, %c0_41, %c0_42] : memref<2x8x16xf32, #tpu.memory_space<vmem>>, vector<2x8x16xf32>
    tpu.vector_store %arg25[%c0_40, %c0_41, %c0_42], %82 {strides = array<i32>} : memref<2x8x16xf32, #tpu.memory_space<vmem>>, vector<2x8x16xf32>,
    %c0_43 = arith.constant 0 : index
    %c0_44 = arith.constant 0 : index
    %c0_45 = arith.constant 0 : index
    %84 = vector.load %arg23[%c0_43, %c0_44, %c0_45] : memref<2x8x1xf32, #tpu.memory_space<vmem>>, vector<2x8x1xf32>
    tpu.vector_store %arg23[%c0_43, %c0_44, %c0_45], %65 {strides = array<i32>} : memref<2x8x1xf32, #tpu.memory_space<vmem>>, vector<2x8x1xf32>,
    %c0_i32_46 = arith.constant 0 : i32
    %85 = arith.cmpi eq, %arg2, %c0_i32_46 : i32
    %86 = arith.extui %85 : i1 to i32
    %c0_i32_47 = arith.constant 0 : i32
    %87 = arith.cmpi ne, %86, %c0_i32_47 : i32
    scf.if %87 {
      %c0_48 = arith.constant 0 : index
      %c0_49 = arith.constant 0 : index
      %c0_50 = arith.constant 0 : index
      %88 = vector.load %arg24[%c0_48, %c0_49, %c0_50] : memref<2x8x1xf32, #tpu.memory_space<vmem>>, vector<2x8x1xf32>
      %89 = tpu.reciprocal %88 {approx = true} : vector<2x8x1xf32> -> vector<2x8x1xf32>
      %c0_51 = arith.constant 0 : index
      %c0_52 = arith.constant 0 : index
      %c0_53 = arith.constant 0 : index
      %90 = vector.load %arg25[%c0_51, %c0_52, %c0_53] : memref<2x8x16xf32, #tpu.memory_space<vmem>>, vector<2x8x16xf32>
      %91 = vector.broadcast %89 : vector<2x8x1xf32> to vector<2x8x16xf32>
      %92 = arith.mulf %90, %91 : vector<2x8x16xf32>
      %93 = vector.extract_strided_slice %92 {offsets = [0, 0, 0], sizes = [1, 8, 16], strides = [1, 1, 1]} : vector<2x8x16xf32> to vector<1x8x16xf32>
      %94 = vector.shape_cast %93 : vector<1x8x16xf32> to vector<8x16xf32>
      %95 = vector.extract_strided_slice %92 {offsets = [1, 0, 0], sizes = [1, 8, 16], strides = [1, 1, 1]} : vector<2x8x16xf32> to vector<1x8x16xf32>
      %96 = vector.shape_cast %95 : vector<1x8x16xf32> to vector<8x16xf32>
      %97 = tpu.concatenate %94, %96 in 1 : vector<8x16xf32>, vector<8x16xf32> -> vector<8x32xf32>
      %98 = arith.truncf %97 : vector<8x32xf32> to vector<8x32xbf16>
      %c0_54 = arith.constant 0 : index
      %c0_55 = arith.constant 0 : index
      %99 = vector.load %arg13[%c0_54, %c0_55] : memref<32x32xbf16, #tpu.memory_space<vmem>>, vector<32x32xbf16>
      %cst_56 = arith.constant dense<0.000000e+00> : vector<8x32xf32>
      %100 = tpu.matmul %98, %99, %cst_56 {dimension_numbers = #tpu.dot_dimension_numbers<[1], [0], [0], [1], [0, 0, 1, 1], [], []>} : vector<8x32xbf16>, vector<32x32xbf16>, vector<8x32xf32> -> vector<8x32xf32>
      %c0_57 = arith.constant 0 : index
      %c0_58 = arith.constant 0 : index
      %101 = vector.load %arg14[%c0_57, %c0_58] : memref<1x32xf32, #tpu.memory_space<vmem>>, vector<1x32xf32>
      %102 = vector.shape_cast %101 : vector<1x32xf32> to vector<32xf32>
      %103 = vector.shape_cast %102 : vector<32xf32> to vector<1x32xf32>
      %104 = vector.broadcast %103 : vector<1x32xf32> to vector<8x32xf32>
      %105 = arith.addf %100, %104 : vector<8x32xf32>
      %c0_59 = arith.constant 0 : index
      %c0_60 = arith.constant 0 : index
      %c0_61 = arith.constant 0 : index
      %106 = vector.load %arg3[%c0_59, %c0_60, %c0_61] : memref<1x8x32xf32, #tpu.memory_space<vmem>>, vector<1x8x32xf32>
      %107 = vector.shape_cast %106 : vector<1x8x32xf32> to vector<8x32xf32>
      %108 = arith.addf %107, %105 : vector<8x32xf32>
      %c0_62 = arith.constant 0 : index
      %c0_63 = arith.constant 0 : index
      %109 = vector.load %arg15[%c0_62, %c0_63] : memref<1x32xf32, #tpu.memory_space<vmem>>, vector<1x32xf32>
      %110 = vector.shape_cast %109 : vector<1x32xf32> to vector<32xf32>
      %c0_64 = arith.constant 0 : index
      %c0_65 = arith.constant 0 : index
      %111 = vector.load %arg16[%c0_64, %c0_65] : memref<1x32xf32, #tpu.memory_space<vmem>>, vector<1x32xf32>
      %112 = vector.shape_cast %111 : vector<1x32xf32> to vector<32xf32>
      %cst_66 = arith.constant dense<0.000000e+00> : vector<8xf32>
      %113 = vector.multi_reduction <add>, %108, %cst_66 [1] : vector<8x32xf32> to vector<8xf32>
      %114 = vector.shape_cast %113 : vector<8xf32> to vector<8x1xf32>
      %cst_67 = arith.constant 3.200000e+01 : f32
      %115 = vector.broadcast %cst_67 : f32 to vector<8x1xf32>
      %116 = arith.divf %114, %115 : vector<8x1xf32>
      %117 = vector.broadcast %116 : vector<8x1xf32> to vector<8x32xf32>
      %118 = arith.subf %108, %117 : vector<8x32xf32>
      %119 = arith.mulf %118, %118 : vector<8x32xf32>
      %cst_68 = arith.constant dense<0.000000e+00> : vector<8xf32>
      %120 = vector.multi_reduction <add>, %119, %cst_68 [1] : vector<8x32xf32> to vector<8xf32>
      %121 = vector.shape_cast %120 : vector<8xf32> to vector<8x1xf32>
      %cst_69 = arith.constant 3.200000e+01 : f32
      %122 = vector.broadcast %cst_69 : f32 to vector<8x1xf32>
      %123 = arith.divf %121, %122 : vector<8x1xf32>
      %124 = vector.broadcast %116 : vector<8x1xf32> to vector<8x32xf32>
      %125 = arith.subf %108, %124 : vector<8x32xf32>
      %cst_70 = arith.constant 9.99999997E-7 : f32
      %126 = vector.broadcast %cst_70 : f32 to vector<8x1xf32>
      %127 = arith.addf %123, %126 : vector<8x1xf32>
      %128 = math.rsqrt %127 : vector<8x1xf32>
      %129 = vector.broadcast %128 : vector<8x1xf32> to vector<8x32xf32>
      %130 = arith.mulf %125, %129 : vector<8x32xf32>
      %131 = vector.shape_cast %110 : vector<32xf32> to vector<1x32xf32>
      %132 = vector.broadcast %131 : vector<1x32xf32> to vector<8x32xf32>
      %133 = arith.mulf %130, %132 : vector<8x32xf32>
      %134 = vector.shape_cast %112 : vector<32xf32> to vector<1x32xf32>
      %135 = vector.broadcast %134 : vector<1x32xf32> to vector<8x32xf32>
      %136 = arith.addf %133, %135 : vector<8x32xf32>
      %137 = arith.truncf %136 : vector<8x32xf32> to vector<8x32xbf16>
      %c0_71 = arith.constant 0 : index
      %c0_72 = arith.constant 0 : index
      %138 = vector.load %arg17[%c0_71, %c0_72] : memref<32x128xbf16, #tpu.memory_space<vmem>>, vector<32x128xbf16>
      %cst_73 = arith.constant dense<0.000000e+00> : vector<8x128xf32>
      %139 = tpu.matmul %137, %138, %cst_73 {dimension_numbers = #tpu.dot_dimension_numbers<[1], [0], [0], [1], [0, 0, 1, 1], [], []>} : vector<8x32xbf16>, vector<32x128xbf16>, vector<8x128xf32> -> vector<8x128xf32>
      %c0_74 = arith.constant 0 : index
      %c0_75 = arith.constant 0 : index
      %140 = vector.load %arg18[%c0_74, %c0_75] : memref<1x128xf32, #tpu.memory_space<vmem>>, vector<1x128xf32>
      %141 = vector.shape_cast %140 : vector<1x128xf32> to vector<128xf32>
      %142 = vector.shape_cast %141 : vector<128xf32> to vector<1x128xf32>
      %143 = vector.broadcast %142 : vector<1x128xf32> to vector<8x128xf32>
      %144 = arith.addf %139, %143 : vector<8x128xf32>
      %cst_76 = arith.constant 5.000000e-01 : f32
      %145 = vector.broadcast %cst_76 : f32 to vector<8x128xf32>
      %146 = arith.mulf %145, %144 : vector<8x128xf32>
      %cst_77 = arith.constant 4.471500e-02 : f32
      %147 = vector.broadcast %cst_77 : f32 to vector<8x128xf32>
      %148 = arith.mulf %147, %144 : vector<8x128xf32>
      %149 = arith.mulf %148, %144 : vector<8x128xf32>
      %150 = arith.mulf %149, %144 : vector<8x128xf32>
      %151 = arith.addf %144, %150 : vector<8x128xf32>
      %cst_78 = arith.constant 0.797884583 : f32
      %152 = vector.broadcast %cst_78 : f32 to vector<8x128xf32>
      %153 = arith.mulf %152, %151 : vector<8x128xf32>
      %154 = math.tanh %153 : vector<8x128xf32>
      %cst_79 = arith.constant 1.000000e+00 : f32
      %155 = vector.broadcast %cst_79 : f32 to vector<8x128xf32>
      %156 = arith.addf %155, %154 : vector<8x128xf32>
      %157 = arith.mulf %146, %156 : vector<8x128xf32>
      %158 = arith.truncf %157 : vector<8x128xf32> to vector<8x128xbf16>
      %c0_80 = arith.constant 0 : index
      %c0_81 = arith.constant 0 : index
      %159 = vector.load %arg19[%c0_80, %c0_81] : memref<128x32xbf16, #tpu.memory_space<vmem>>, vector<128x32xbf16>
      %cst_82 = arith.constant dense<0.000000e+00> : vector<8x32xf32>
      %160 = tpu.matmul %158, %159, %cst_82 {dimension_numbers = #tpu.dot_dimension_numbers<[1], [0], [0], [1], [0, 0, 1, 1], [], []>} : vector<8x128xbf16>, vector<128x32xbf16>, vector<8x32xf32> -> vector<8x32xf32>
      %c0_83 = arith.constant 0 : index
      %c0_84 = arith.constant 0 : index
      %161 = vector.load %arg20[%c0_83, %c0_84] : memref<1x32xf32, #tpu.memory_space<vmem>>, vector<1x32xf32>
      %162 = vector.shape_cast %161 : vector<1x32xf32> to vector<32xf32>
      %163 = vector.shape_cast %162 : vector<32xf32> to vector<1x32xf32>
      %164 = vector.broadcast %163 : vector<1x32xf32> to vector<8x32xf32>
      %165 = arith.addf %160, %164 : vector<8x32xf32>
      %166 = arith.addf %108, %165 : vector<8x32xf32>
      %c0_85 = arith.constant 0 : index
      %c0_86 = arith.constant 0 : index
      %c0_87 = arith.constant 0 : index
      %167 = vector.load %arg21[%c0_85, %c0_86, %c0_87] : memref<1x8x32xf32, #tpu.memory_space<vmem>>, vector<1x8x32xf32>
      %168 = vector.shape_cast %167 : vector<1x8x32xf32> to vector<8x32xf32>
      %169 = vector.shape_cast %166 : vector<8x32xf32> to vector<1x8x32xf32>
      tpu.vector_store %arg21[%c0_85, %c0_86, %c0_87], %169 {strides = array<i32>} : memref<1x8x32xf32, #tpu.memory_space<vmem>>, vector<1x8x32xf32>,
    } else {
    }
    return
  }
  func.func @transform_0(%arg0: i32, %arg1: i32, %arg2: i32) -> (i32, i32, i32) {
    %c0_i32 = arith.constant 0 : i32
    %c0_i32_0 = arith.constant 0 : i32
    return %arg0, %arg1, %c0_i32 : i32, i32, i32
  }
  func.func @transform_1(%arg0: i32, %arg1: i32, %arg2: i32) -> (i32, i32, i32) {
    %c0_i32 = arith.constant 0 : i32
    %c0_i32_0 = arith.constant 0 : i32
    return %arg0, %arg2, %c0_i32 : i32, i32, i32
  }
  func.func @transform_2(%arg0: i32, %arg1: i32, %arg2: i32) -> (i32, i32) {
    %c0_i32 = arith.constant 0 : i32
    %c0_i32_0 = arith.constant 0 : i32
    %c0_i32_1 = arith.constant 0 : i32
    return %c0_i32, %c0_i32_0 : i32, i32
  }
  func.func @transform_3(%arg0: i32, %arg1: i32, %arg2: i32) -> (i32, i32) {
    %c0_i32 = arith.constant 0 : i32
    %c0_i32_0 = arith.constant 0 : i32
    %c0_i32_1 = arith.constant 0 : i32
    return %c0_i32, %c0_i32_0 : i32, i32
  }
  func.func @transform_4(%arg0: i32, %arg1: i32, %arg2: i32) -> (i32, i32) {
    %c0_i32 = arith.constant 0 : i32
    %c0_i32_0 = arith.constant 0 : i32
    %c0_i32_1 = arith.constant 0 : i32
    return %c0_i32, %c0_i32_0 : i32, i32
  }
  func.func @transform_5(%arg0: i32, %arg1: i32, %arg2: i32) -> (i32, i32) {
    %c0_i32 = arith.constant 0 : i32
    %c0_i32_0 = arith.constant 0 : i32
    %c0_i32_1 = arith.constant 0 : i32
    return %c0_i32, %c0_i32_0 : i32, i32
  }
  func.func @transform_6(%arg0: i32, %arg1: i32, %arg2: i32) -> (i32, i32) {
    %c0_i32 = arith.constant 0 : i32
    %c0_i32_0 = arith.constant 0 : i32
    %c0_i32_1 = arith.constant 0 : i32
    return %c0_i32, %c0_i32_0 : i32, i32
  }
  func.func @transform_7(%arg0: i32, %arg1: i32, %arg2: i32) -> (i32, i32) {
    %c0_i32 = arith.constant 0 : i32
    %c0_i32_0 = arith.constant 0 : i32
    %c0_i32_1 = arith.constant 0 : i32
    return %c0_i32, %c0_i32_0 : i32, i32
  }
  func.func @transform_8(%arg0: i32, %arg1: i32, %arg2: i32) -> (i32, i32) {
    %c0_i32 = arith.constant 0 : i32
    %c0_i32_0 = arith.constant 0 : i32
    %c0_i32_1 = arith.constant 0 : i32
    return %c0_i32, %c0_i32_0 : i32, i32
  }
  func.func @transform_9(%arg0: i32, %arg1: i32, %arg2: i32) -> (i32, i32) {
    %c0_i32 = arith.constant 0 : i32
    %c0_i32_0 = arith.constant 0 : i32
    %c0_i32_1 = arith.constant 0 : i32
    return %c0_i32, %c0_i32_0 : i32, i32
  }
  func.func @transform_10(%arg0: i32, %arg1: i32, %arg2: i32) -> (i32, i32) {
    %c0_i32 = arith.constant 0 : i32
    %c0_i32_0 = arith.constant 0 : i32
    %c0_i32_1 = arith.constant 0 : i32
    return %c0_i32, %c0_i32_0 : i32, i32
  }
  func.func @transform_11(%arg0: i32, %arg1: i32, %arg2: i32) -> (i32, i32) {
    %c0_i32 = arith.constant 0 : i32
    %c0_i32_0 = arith.constant 0 : i32
    %c0_i32_1 = arith.constant 0 : i32
    return %c0_i32, %c0_i32_0 : i32, i32
  }
  func.func @transform_12(%arg0: i32, %arg1: i32, %arg2: i32) -> (i32, i32) {
    %c0_i32 = arith.constant 0 : i32
    %c0_i32_0 = arith.constant 0 : i32
    %c0_i32_1 = arith.constant 0 : i32
    return %c0_i32, %c0_i32_0 : i32, i32
  }
  func.func @transform_13(%arg0: i32, %arg1: i32, %arg2: i32) -> (i32, i32) {
    %c0_i32 = arith.constant 0 : i32
    %c0_i32_0 = arith.constant 0 : i32
    %c0_i32_1 = arith.constant 0 : i32
    return %c0_i32, %c0_i32_0 : i32, i32
  }
  func.func @transform_14(%arg0: i32, %arg1: i32, %arg2: i32) -> (i32, i32) {
    %c0_i32 = arith.constant 0 : i32
    %c0_i32_0 = arith.constant 0 : i32
    %c0_i32_1 = arith.constant 0 : i32
    return %c0_i32, %c0_i32_0 : i32, i32
  }
  func.func @transform_15(%arg0: i32, %arg1: i32, %arg2: i32) -> (i32, i32) {
    %c0_i32 = arith.constant 0 : i32
    %c0_i32_0 = arith.constant 0 : i32
    %c0_i32_1 = arith.constant 0 : i32
    return %c0_i32, %c0_i32_0 : i32, i32
  }
  func.func @transform_16(%arg0: i32, %arg1: i32, %arg2: i32) -> (i32, i32) {
    %c0_i32 = arith.constant 0 : i32
    %c0_i32_0 = arith.constant 0 : i32
    %c0_i32_1 = arith.constant 0 : i32
    return %c0_i32, %c0_i32_0 : i32, i32
  }
  func.func @transform_17(%arg0: i32, %arg1: i32, %arg2: i32) -> (i32, i32) {
    %c0_i32 = arith.constant 0 : i32
    %c0_i32_0 = arith.constant 0 : i32
    %c0_i32_1 = arith.constant 0 : i32
    return %c0_i32, %c0_i32_0 : i32, i32
  }
  func.func @transform_18(%arg0: i32, %arg1: i32, %arg2: i32) -> (i32, i32, i32) {
    %c0_i32 = arith.constant 0 : i32
    %c0_i32_0 = arith.constant 0 : i32
    return %arg0, %arg1, %c0_i32 : i32, i32, i32
  }
}

</mosaic_0001>

<llo_original>
// kernel: tpu_custom_call.1
$region0: #{tpu_custom_call.1}
  #allocation0 [shape = 'u32[]', space=smem, size = 0x4, offset = 0x4, fixed_abs, tag = 'smem constant byte address 0x4 - core index']
  #allocation1 [shape = 'u32[72,128]{1,0:T(1,128)}', space=vmem, size = 0x9000, scoped, tag = 'internal scratch']
  #allocation2 [shape = 'bf16[2,8,16]{2,1,0:T(8,128)(2,1)}', space=vmem, size = 0x1000, scoped, tag = 'scratch operand']
  #allocation3 [shape = 'f32[2,8,1]{2,1,0:T(8,128)}', space=vmem, size = 0x2000, scoped, tag = 'scratch operand']
  #allocation4 [shape = 'f32[2,8,1]{2,1,0:T(8,128)}', space=vmem, size = 0x2000, scoped, tag = 'scratch operand']
  #allocation5 [shape = 'f32[2,8,16]{2,1,0:T(8,128)}', space=vmem, size = 0x2000, scoped, tag = 'scratch operand']
  %s0 = inlined_call_operand.vmem [shape: f32[2,8,32], index: 0, kind: input, shape index: {}]
  %s1 = inlined_call_operand.vmem [shape: f32[2,8,32], index: 1, kind: input, shape index: {}]
  %s2 = inlined_call_operand.vmem [shape: f32[1,32], index: 2, kind: input, shape index: {}]
  %s3 = inlined_call_operand.vmem [shape: f32[1,32], index: 3, kind: input, shape index: {}]
  %s4 = inlined_call_operand.vmem [shape: bf16[32,32], index: 4, kind: input, shape index: {}]
  %s5 = inlined_call_operand.vmem [shape: f32[1,32], index: 5, kind: input, shape index: {}]
  %s6 = inlined_call_operand.vmem [shape: bf16[32,32], index: 6, kind: input, shape index: {}]
  %s7 = inlined_call_operand.vmem [shape: f32[1,32], index: 7, kind: input, shape index: {}]
  %s8 = inlined_call_operand.vmem [shape: bf16[32,32], index: 8, kind: input, shape index: {}]
  %s9 = inlined_call_operand.vmem [shape: f32[1,32], index: 9, kind: input, shape index: {}]
  %s10 = inlined_call_operand.hbm [shape: bf16[32,32], index: 10, kind: input, shape index: {}]
  %s11 = inlined_call_operand.vmem [shape: f32[1,32], index: 11, kind: input, shape index: {}]
  %s12 = inlined_call_operand.vmem [shape: f32[1,32], index: 12, kind: input, shape index: {}]
  %s13 = inlined_call_operand.vmem [shape: f32[1,32], index: 13, kind: input, shape index: {}]
  %s14 = inlined_call_operand.hbm [shape: bf16[32,128], index: 14, kind: input, shape index: {}]
  %s15 = inlined_call_operand.vmem [shape: f32[1,128], index: 15, kind: input, shape index: {}]
  %s16 = inlined_call_operand.vmem [shape: bf16[128,32], index: 16, kind: input, shape index: {}]
  %s17 = inlined_call_operand.vmem [shape: f32[1,32], index: 17, kind: input, shape index: {}]
  %s18 = inlined_call_operand.hbm [shape: f32[2,8,32], index: 18, kind: output, shape index: {}]
  %s19 = sld [smem:[#allocation0]]
  $region121: #{tpu_custom_call.1} parent=0
    _
  %s21 = ssub.s32 1, %s19
  %s22 = scalar_select 0, %s21, %s19
  $region1: #{tpu_custom_call.1} parent=0
    #allocation6 [shape = 'u8[8192]{0}', space=vmem, size = 0x2000, scoped, tag = 'input window, operand 10, single buffered']
    #allocation7 [shape = 's32[2]{0}', space=sflag, size = 0x8, scoped, tag = 'scoped memory for tpu_custom_call.1']
    #allocation8 [shape = 's32[2]{0}', space=sflag, size = 0x8, scoped, tag = 'scoped memory for tpu_custom_call.1']
    #allocation9 [shape = 'u8[8192]{0}', space=vmem, size = 0x2000, scoped, tag = 'input window, operand 14, single buffered']
    #allocation10 [shape = 's32[1]{0}', space=sflag, size = 0x4, scoped, tag = 'scoped memory for tpu_custom_call.1']
    #allocation11 [shape = 'u8[8192]{0}', space=vmem, size = 0x2000, scoped, tag = 'output window, operand 0']
    %23 = vsyncpa [#allocation7], 0
    %24 = vsyncpa [#allocation10], 0
    %25 = vsyncpa [#allocation8], 0
    %s26 = scalar_lea.sflag [#allocation8], 1
    %27 = vsyncpa %s26, 0
    loop: start=0, step=1, limit=4
    $region2: #{tpu_custom_call.1} parent=1 // loop_pre_header
      _
    $region3: #{tpu_custom_call.1} parent=1 // loop_header
      %s29 = sphi 0, %s33
      %p30 = scmp.ge.s32.totalorder %s29, 4
      %s36 = sphi 0, %s55
      %s37 = sphi 0, %s51
      %s38 = sphi 0, %s47
      %s39 = sphi 0, %s36
      %s40 = sphi 0, %s37
      %s41 = sphi 0, %s38
      %s42 = sphi 0, %s39
      %s43 = sphi 0, %s40
      %s44 = sphi 0, %s41
      %s60 = sphi 0, %s62
      %s63 = sphi 0, %s60
      %s64 = sphi 0, %s63
      %s80 = sphi 0, %s64
      %s88 = sphi 0, %s90
      %s91 = sphi 0, %s88
      %s92 = sphi 0, %s91
      %s108 = sphi 0, %s92
      %s112 = sphi 0, %s112
      %s114 = sphi 0, %s112
      %s115 = sphi 0, %s114
      %s129 = sphi 0, %s115
      %s133 = sphi 0, %s133
      %s135 = sphi 0, %s133
      %s136 = sphi 0, %s135
      %s150 = sphi 0, %s136
      %s154 = sphi 0, %s154
      %s156 = sphi 0, %s154
      %s157 = sphi 0, %s156
      %s171 = sphi 0, %s157
      %s175 = sphi 0, %s175
      %s177 = sphi 0, %s175
      %s178 = sphi 0, %s177
      %s192 = sphi 0, %s178
      %s196 = sphi 0, %s196
      %s198 = sphi 0, %s196
      %s199 = sphi 0, %s198
      %s213 = sphi 0, %s199
      %s217 = sphi 0, %s217
      %s219 = sphi 0, %s217
      %s220 = sphi 0, %s219
      %s234 = sphi 0, %s220
      %s238 = sphi 0, %s238
      %s240 = sphi 0, %s238
      %s241 = sphi 0, %s240
      %s255 = sphi 0, %s241
      %s259 = sphi 0, %s259
      %s261 = sphi 0, %s259
      %s262 = sphi 0, %s261
      %s276 = sphi 0, %s262
      %s280 = sphi 0, %s280
      %s282 = sphi 0, %s280
      %s283 = sphi 0, %s282
      %s297 = sphi 0, %s283
      %s301 = sphi 0, %s301
      %s303 = sphi 0, %s301
      %s304 = sphi 0, %s303
      %s318 = sphi 0, %s304
      %s322 = sphi 0, %s322
      %s324 = sphi 0, %s322
      %s325 = sphi 0, %s324
      %s339 = sphi 0, %s325
      %s343 = sphi 0, %s343
      %s345 = sphi 0, %s343
      %s346 = sphi 0, %s345
      %s360 = sphi 0, %s346
      %s364 = sphi 0, %s364
      %s366 = sphi 0, %s364
      %s367 = sphi 0, %s366
      %s381 = sphi 0, %s367
      %s385 = sphi 0, %s385
      %s387 = sphi 0, %s385
      %s388 = sphi 0, %s387
      %s402 = sphi 0, %s388
      %s406 = sphi 0, %s406
      %s408 = sphi 0, %s406
      %s409 = sphi 0, %s408
      %s423 = sphi 0, %s409
      %s427 = sphi 0, %s427
      %s429 = sphi 0, %s427
      %s430 = sphi 0, %s429
      %s444 = sphi 0, %s430
      %s452 = sphi 0, %s454
      %s455 = sphi 0, %s452
      %s456 = sphi 0, %s455
      %s472 = sphi 0, %s456
    $region4: #{tpu_custom_call.1} parent=1 // loop_header_branch
      %32 = sbr.rel (%p30) target = $region8
    $region5: #{tpu_custom_call.1} parent=1 // loop_body
      %s34 = ssub.s32 %s29, 1
      %s35 = ssub.s32 %s29, 2
      %s45 = sadd.s32 1, %s38
      %p46 = scmp.ge.s32.totalorder %s45, 1
      %s47 = scalar_select %p46, 0, %s45
      %s48 = sadd.s32 1, %s37
      %s49 = scalar_select %p46, %s48, %s37
      %p50 = scmp.ge.s32.totalorder %s49, 1
      %s51 = scalar_select %p50, 0, %s49
      %s52 = sadd.s32 1, %s36
      %s53 = scalar_select %p50, %s52, %s36
      %p54 = scmp.ge.s32.totalorder %s53, 2
      %s55 = scalar_select %p54, 0, %s53
      %s56 = ssub.s32 %s36, %s55
      %s57 = ssub.s32 %s37, %s51
      %s58 = sor.u32 %s56, %s57
      %p59 = scmp.eq.s32.totalorder %s58, 0
      %s61 = sadd.s32 %s60, 1
      %s62 = scalar_select %p59, %s60, %s61
      %p65 = pneg %p59
      %p66 = scmp.eq.s32.totalorder %s29, 1
      %p67 = por %p65, %p66
      %p68 = scmp.ne.s32.totalorder %s60, %s63
      %p69 = scmp.eq.s32.totalorder %s29, 0
      %p70 = por %p68, %p69
      %p71 = scmp.ne.s32.totalorder %s60, %s63
      %p72 = scmp.eq.s32.totalorder %s34, 1
      %p73 = por %p71, %p72
      %p74 = scmp.ne.s32.totalorder %s63, %s64
      %p75 = scmp.eq.s32.totalorder %s34, 0
      %p76 = por %p74, %p75
      %p77 = scmp.ne.s32.totalorder %s63, %s64
      %p78 = scmp.eq.s32.totalorder %s35, 1
      %p79 = por %p77, %p78
      %p81 = scmp.ne.s32.totalorder %s64, %s80
      %p82 = scmp.eq.s32.totalorder %s35, 0
      %p83 = por %p81, %p82
      %s84 = ssub.s32 %s36, %s55
      %s85 = ssub.s32 %s38, %s47
      %s86 = sor.u32 %s84, %s85
      %p87 = scmp.eq.s32.totalorder %s86, 0
      %s89 = sadd.s32 %s88, 1
      %s90 = scalar_select %p87, %s88, %s89
      %p93 = pneg %p87
      %p94 = scmp.eq.s32.totalorder %s29, 1
      %p95 = por %p93, %p94
      %p96 = scmp.ne.s32.totalorder %s88, %s91
      %p97 = scmp.eq.s32.totalorder %s29, 0
      %p98 = por %p96, %p97
      %p99 = scmp.ne.s32.totalorder %s88, %s91
      %p100 = scmp.eq.s32.totalorder %s34, 1
      %p101 = por %p99, %p100
      %p102 = scmp.ne.s32.totalorder %s91, %s92
      %p103 = scmp.eq.s32.totalorder %s34, 0
      %p104 = por %p102, %p103
      %p105 = scmp.ne.s32.totalorder %s91, %s92
      %p106 = scmp.eq.s32.totalorder %s35, 1
      %p107 = por %p105, %p106
      %p109 = scmp.ne.s32.totalorder %s92, %s108
      %p110 = scmp.eq.s32.totalorder %s35, 0
      %p111 = por %p109, %p110
      %s113 = sadd.s32 %s112, 1
      %p116 = scmp.eq.s32.totalorder %s29, 1
      %p117 = scmp.ne.s32.totalorder %s112, %s114
      %p118 = scmp.eq.s32.totalorder %s29, 0
      %p119 = por %p117, %p118
      %p120 = scmp.ne.s32.totalorder %s112, %s114
      %p121 = scmp.eq.s32.totalorder %s34, 1
      %p122 = por %p120, %p121
      %p123 = scmp.ne.s32.totalorder %s114, %s115
      %p124 = scmp.eq.s32.totalorder %s34, 0
      %p125 = por %p123, %p124
      %p126 = scmp.ne.s32.totalorder %s114, %s115
      %p127 = scmp.eq.s32.totalorder %s35, 1
      %p128 = por %p126, %p127
      %p130 = scmp.ne.s32.totalorder %s115, %s129
      %p131 = scmp.eq.s32.totalorder %s35, 0
      %p132 = por %p130, %p131
      %s134 = sadd.s32 %s133, 1
      %p137 = scmp.eq.s32.totalorder %s29, 1
      %p138 = scmp.ne.s32.totalorder %s133, %s135
      %p139 = scmp.eq.s32.totalorder %s29, 0
      %p140 = por %p138, %p139
      %p141 = scmp.ne.s32.totalorder %s133, %s135
      %p142 = scmp.eq.s32.totalorder %s34, 1
      %p143 = por %p141, %p142
      %p144 = scmp.ne.s32.totalorder %s135, %s136
      %p145 = scmp.eq.s32.totalorder %s34, 0
      %p146 = por %p144, %p145
      %p147 = scmp.ne.s32.totalorder %s135, %s136
      %p148 = scmp.eq.s32.totalorder %s35, 1
      %p149 = por %p147, %p148
      %p151 = scmp.ne.s32.totalorder %s136, %s150
      %p152 = scmp.eq.s32.totalorder %s35, 0
      %p153 = por %p151, %p152
      %s155 = sadd.s32 %s154, 1
      %p158 = scmp.eq.s32.totalorder %s29, 1
      %p159 = scmp.ne.s32.totalorder %s154, %s156
      %p160 = scmp.eq.s32.totalorder %s29, 0
      %p161 = por %p159, %p160
      %p162 = scmp.ne.s32.totalorder %s154, %s156
      %p163 = scmp.eq.s32.totalorder %s34, 1
      %p164 = por %p162, %p163
      %p165 = scmp.ne.s32.totalorder %s156, %s157
      %p166 = scmp.eq.s32.totalorder %s34, 0
      %p167 = por %p165, %p166
      %p168 = scmp.ne.s32.totalorder %s156, %s157
      %p169 = scmp.eq.s32.totalorder %s35, 1
      %p170 = por %p168, %p169
      %p172 = scmp.ne.s32.totalorder %s157, %s171
      %p173 = scmp.eq.s32.totalorder %s35, 0
      %p174 = por %p172, %p173
      %s176 = sadd.s32 %s175, 1
      %p179 = scmp.eq.s32.totalorder %s29, 1
      %p180 = scmp.ne.s32.totalorder %s175, %s177
      %p181 = scmp.eq.s32.totalorder %s29, 0
      %p182 = por %p180, %p181
      %p183 = scmp.ne.s32.totalorder %s175, %s177
      %p184 = scmp.eq.s32.totalorder %s34, 1
      %p185 = por %p183, %p184
      %p186 = scmp.ne.s32.totalorder %s177, %s178
      %p187 = scmp.eq.s32.totalorder %s34, 0
      %p188 = por %p186, %p187
      %p189 = scmp.ne.s32.totalorder %s177, %s178
      %p190 = scmp.eq.s32.totalorder %s35, 1
      %p191 = por %p189, %p190
      %p193 = scmp.ne.s32.totalorder %s178, %s192
      %p194 = scmp.eq.s32.totalorder %s35, 0
      %p195 = por %p193, %p194
      %s197 = sadd.s32 %s196, 1
      %p200 = scmp.eq.s32.totalorder %s29, 1
      %p201 = scmp.ne.s32.totalorder %s196, %s198
      %p202 = scmp.eq.s32.totalorder %s29, 0
      %p203 = por %p201, %p202
      %p204 = scmp.ne.s32.totalorder %s196, %s198
      %p205 = scmp.eq.s32.totalorder %s34, 1
      %p206 = por %p204, %p205
      %p207 = scmp.ne.s32.totalorder %s198, %s199
      %p208 = scmp.eq.s32.totalorder %s34, 0
      %p209 = por %p207, %p208
      %p210 = scmp.ne.s32.totalorder %s198, %s199
      %p211 = scmp.eq.s32.totalorder %s35, 1
      %p212 = por %p210, %p211
      %p214 = scmp.ne.s32.totalorder %s199, %s213
      %p215 = scmp.eq.s32.totalorder %s35, 0
      %p216 = por %p214, %p215
      %s218 = sadd.s32 %s217, 1
      %p221 = scmp.eq.s32.totalorder %s29, 1
      %p222 = scmp.ne.s32.totalorder %s217, %s219
      %p223 = scmp.eq.s32.totalorder %s29, 0
      %p224 = por %p222, %p223
      %p225 = scmp.ne.s32.totalorder %s217, %s219
      %p226 = scmp.eq.s32.totalorder %s34, 1
      %p227 = por %p225, %p226
      %p228 = scmp.ne.s32.totalorder %s219, %s220
      %p229 = scmp.eq.s32.totalorder %s34, 0
      %p230 = por %p228, %p229
      %p231 = scmp.ne.s32.totalorder %s219, %s220
      %p232 = scmp.eq.s32.totalorder %s35, 1
      %p233 = por %p231, %p232
      %p235 = scmp.ne.s32.totalorder %s220, %s234
      %p236 = scmp.eq.s32.totalorder %s35, 0
      %p237 = por %p235, %p236
      %s239 = sadd.s32 %s238, 1
      %p242 = scmp.eq.s32.totalorder %s29, 1
      %p243 = scmp.ne.s32.totalorder %s238, %s240
      %p244 = scmp.eq.s32.totalorder %s29, 0
      %p245 = por %p243, %p244
      %p246 = scmp.ne.s32.totalorder %s238, %s240
      %p247 = scmp.eq.s32.totalorder %s34, 1
      %p248 = por %p246, %p247
      %p249 = scmp.ne.s32.totalorder %s240, %s241
      %p250 = scmp.eq.s32.totalorder %s34, 0
      %p251 = por %p249, %p250
      %p252 = scmp.ne.s32.totalorder %s240, %s241
      %p253 = scmp.eq.s32.totalorder %s35, 1
      %p254 = por %p252, %p253
      %p256 = scmp.ne.s32.totalorder %s241, %s255
      %p257 = scmp.eq.s32.totalorder %s35, 0
      %p258 = por %p256, %p257
      %s260 = sadd.s32 %s259, 1
      %p263 = scmp.eq.s32.totalorder %s29, 1
      %p264 = scmp.ne.s32.totalorder %s259, %s261
      %p265 = scmp.eq.s32.totalorder %s29, 0
      %p266 = por %p264, %p265
      %p267 = scmp.ne.s32.totalorder %s259, %s261
      %p268 = scmp.eq.s32.totalorder %s34, 1
      %p269 = por %p267, %p268
      %p270 = scmp.ne.s32.totalorder %s261, %s262
      %p271 = scmp.eq.s32.totalorder %s34, 0
      %p272 = por %p270, %p271
      %p273 = scmp.ne.s32.totalorder %s261, %s262
      %p274 = scmp.eq.s32.totalorder %s35, 1
      %p275 = por %p273, %p274
      %p277 = scmp.ne.s32.totalorder %s262, %s276
      %p278 = scmp.eq.s32.totalorder %s35, 0
      %p279 = por %p277, %p278
      %s281 = sadd.s32 %s280, 1
      %p284 = scmp.eq.s32.totalorder %s29, 1
      %p285 = scmp.ne.s32.totalorder %s280, %s282
      %p286 = scmp.eq.s32.totalorder %s29, 0
      %p287 = por %p285, %p286
      %p288 = scmp.ne.s32.totalorder %s280, %s282
      %p289 = scmp.eq.s32.totalorder %s34, 1
      %p290 = por %p288, %p289
      %p291 = scmp.ne.s32.totalorder %s282, %s283
      %p292 = scmp.eq.s32.totalorder %s34, 0
      %p293 = por %p291, %p292
      %p294 = scmp.ne.s32.totalorder %s282, %s283
      %p295 = scmp.eq.s32.totalorder %s35, 1
      %p296 = por %p294, %p295
      %p298 = scmp.ne.s32.totalorder %s283, %s297
      %p299 = scmp.eq.s32.totalorder %s35, 0
      %p300 = por %p298, %p299
      %s302 = sadd.s32 %s301, 1
      %p305 = scmp.eq.s32.totalorder %s29, 1
      %p306 = scmp.ne.s32.totalorder %s301, %s303
      %p307 = scmp.eq.s32.totalorder %s29, 0
      %p308 = por %p306, %p307
      %p309 = scmp.ne.s32.totalorder %s301, %s303
      %p310 = scmp.eq.s32.totalorder %s34, 1
      %p311 = por %p309, %p310
      %p312 = scmp.ne.s32.totalorder %s303, %s304
      %p313 = scmp.eq.s32.totalorder %s34, 0
      %p314 = por %p312, %p313
      %p315 = scmp.ne.s32.totalorder %s303, %s304
      %p316 = scmp.eq.s32.totalorder %s35, 1
      %p317 = por %p315, %p316
      %p319 = scmp.ne.s32.totalorder %s304, %s318
      %p320 = scmp.eq.s32.totalorder %s35, 0
      %p321 = por %p319, %p320
      %s323 = sadd.s32 %s322, 1
      %p326 = scmp.eq.s32.totalorder %s29, 1
      %p327 = scmp.ne.s32.totalorder %s322, %s324
      %p328 = scmp.eq.s32.totalorder %s29, 0
      %p329 = por %p327, %p328
      %p330 = scmp.ne.s32.totalorder %s322, %s324
      %p331 = scmp.eq.s32.totalorder %s34, 1
      %p332 = por %p330, %p331
      %p333 = scmp.ne.s32.totalorder %s324, %s325
      %p334 = scmp.eq.s32.totalorder %s34, 0
      %p335 = por %p333, %p334
      %p336 = scmp.ne.s32.totalorder %s324, %s325
      %p337 = scmp.eq.s32.totalorder %s35, 1
      %p338 = por %p336, %p337
      %p340 = scmp.ne.s32.totalorder %s325, %s339
      %p341 = scmp.eq.s32.totalorder %s35, 0
      %p342 = por %p340, %p341
      %s344 = sadd.s32 %s343, 1
      %p347 = scmp.eq.s32.totalorder %s29, 1
      %p348 = scmp.ne.s32.totalorder %s343, %s345
      %p349 = scmp.eq.s32.totalorder %s29, 0
      %p350 = por %p348, %p349
      %p351 = scmp.ne.s32.totalorder %s343, %s345
      %p352 = scmp.eq.s32.totalorder %s34, 1
      %p353 = por %p351, %p352
      %p354 = scmp.ne.s32.totalorder %s345, %s346
      %p355 = scmp.eq.s32.totalorder %s34, 0
      %p356 = por %p354, %p355
      %p357 = scmp.ne.s32.totalorder %s345, %s346
      %p358 = scmp.eq.s32.totalorder %s35, 1
      %p359 = por %p357, %p358
      %p361 = scmp.ne.s32.totalorder %s346, %s360
      %p362 = scmp.eq.s32.totalorder %s35, 0
      %p363 = por %p361, %p362
      %s365 = sadd.s32 %s364, 1
      %p368 = scmp.eq.s32.totalorder %s29, 1
      %p369 = scmp.ne.s32.totalorder %s364, %s366
      %p370 = scmp.eq.s32.totalorder %s29, 0
      %p371 = por %p369, %p370
      %p372 = scmp.ne.s32.totalorder %s364, %s366
      %p373 = scmp.eq.s32.totalorder %s34, 1
      %p374 = por %p372, %p373
      %p375 = scmp.ne.s32.totalorder %s366, %s367
      %p376 = scmp.eq.s32.totalorder %s34, 0
      %p377 = por %p375, %p376
      %p378 = scmp.ne.s32.totalorder %s366, %s367
      %p379 = scmp.eq.s32.totalorder %s35, 1
      %p380 = por %p378, %p379
      %p382 = scmp.ne.s32.totalorder %s367, %s381
      %p383 = scmp.eq.s32.totalorder %s35, 0
      %p384 = por %p382, %p383
      %s386 = sadd.s32 %s385, 1
      %p389 = scmp.eq.s32.totalorder %s29, 1
      %p390 = scmp.ne.s32.totalorder %s385, %s387
      %p391 = scmp.eq.s32.totalorder %s29, 0
      %p392 = por %p390, %p391
      %p393 = scmp.ne.s32.totalorder %s385, %s387
      %p394 = scmp.eq.s32.totalorder %s34, 1
      %p395 = por %p393, %p394
      %p396 = scmp.ne.s32.totalorder %s387, %s388
      %p397 = scmp.eq.s32.totalorder %s34, 0
      %p398 = por %p396, %p397
      %p399 = scmp.ne.s32.totalorder %s387, %s388
      %p400 = scmp.eq.s32.totalorder %s35, 1
      %p401 = por %p399, %p400
      %p403 = scmp.ne.s32.totalorder %s388, %s402
      %p404 = scmp.eq.s32.totalorder %s35, 0
      %p405 = por %p403, %p404
      %s407 = sadd.s32 %s406, 1
      %p410 = scmp.eq.s32.totalorder %s29, 1
      %p411 = scmp.ne.s32.totalorder %s406, %s408
      %p412 = scmp.eq.s32.totalorder %s29, 0
      %p413 = por %p411, %p412
      %p414 = scmp.ne.s32.totalorder %s406, %s408
      %p415 = scmp.eq.s32.totalorder %s34, 1
      %p416 = por %p414, %p415
      %p417 = scmp.ne.s32.totalorder %s408, %s409
      %p418 = scmp.eq.s32.totalorder %s34, 0
      %p419 = por %p417, %p418
      %p420 = scmp.ne.s32.totalorder %s408, %s409
      %p421 = scmp.eq.s32.totalorder %s35, 1
      %p422 = por %p420, %p421
      %p424 = scmp.ne.s32.totalorder %s409, %s423
      %p425 = scmp.eq.s32.totalorder %s35, 0
      %p426 = por %p424, %p425
      %s428 = sadd.s32 %s427, 1
      %p431 = scmp.eq.s32.totalorder %s29, 1
      %p432 = scmp.ne.s32.totalorder %s427, %s429
      %p433 = scmp.eq.s32.totalorder %s29, 0
      %p434 = por %p432, %p433
      %p435 = scmp.ne.s32.totalorder %s427, %s429
      %p436 = scmp.eq.s32.totalorder %s34, 1
      %p437 = por %p435, %p436
      %p438 = scmp.ne.s32.totalorder %s429, %s430
      %p439 = scmp.eq.s32.totalorder %s34, 0
      %p440 = por %p438, %p439
      %p441 = scmp.ne.s32.totalorder %s429, %s430
      %p442 = scmp.eq.s32.totalorder %s35, 1
      %p443 = por %p441, %p442
      %p445 = scmp.ne.s32.totalorder %s430, %s444
      %p446 = scmp.eq.s32.totalorder %s35, 0
      %p447 = por %p445, %p446
      %s448 = ssub.s32 %s36, %s55
      %s449 = ssub.s32 %s37, %s51
      %s450 = sor.u32 %s448, %s449
      %p451 = scmp.eq.s32.totalorder %s450, 0
      %s453 = sadd.s32 %s452, 1
      %s454 = scalar_select %p451, %s452, %s453
      %p457 = pneg %p451
      %p458 = scmp.eq.s32.totalorder %s29, 1
      %p459 = por %p457, %p458
      %p460 = scmp.ne.s32.totalorder %s452, %s455
      %p461 = scmp.eq.s32.totalorder %s29, 0
      %p462 = por %p460, %p461
      %p463 = scmp.ne.s32.totalorder %s452, %s455
      %p464 = scmp.eq.s32.totalorder %s34, 1
      %p465 = por %p463, %p464
      %p466 = scmp.ne.s32.totalorder %s455, %s456
      %p467 = scmp.eq.s32.totalorder %s34, 0
      %p468 = por %p466, %p467
      %p469 = scmp.ne.s32.totalorder %s455, %s456
      %p470 = scmp.eq.s32.totalorder %s35, 1
      %p471 = por %p469, %p470
      %p473 = scmp.ne.s32.totalorder %s456, %s472
      %p474 = scmp.eq.s32.totalorder %s35, 0
      %p475 = por %p473, %p474
      %p476 = scmp.le.s32.totalorder 1, %s29
      %p477 = scmp.lt.s32.totalorder %s29, 3
      %p478 = pnand %p476, %p477
      %p479 = pneg %p478
      // Predicated region
      $region9: #{tpu_custom_call.1} parent=5 // pred_check
        _
      $region10: #{tpu_custom_call.1} parent=5 // pred_check_branch
        %481 = sbr.rel (%p478) target = $region12
      $region11: #{tpu_custom_call.1} parent=5 // pred_region
        %s482 = ssub.s32 %s29, 1
        // Predicated region
        $region13: #{tpu_custom_call.1} parent=11 // pred_check
          %p483 = pneg %p125
        $region14: #{tpu_custom_call.1} parent=11 // pred_check_branch
          %485 = sbr.rel (%p483) target = $region16
        $region15: #{tpu_custom_call.1} parent=11 // pred_region
          _
        $region16: #{tpu_custom_call.1} parent=11 // pred_fallthru
          _
        // Predicated region
        $region17: #{tpu_custom_call.1} parent=11 // pred_check
          %p486 = pneg %p146
        $region18: #{tpu_custom_call.1} parent=11 // pred_check_branch
          %488 = sbr.rel (%p486) target = $region20
        $region19: #{tpu_custom_call.1} parent=11 // pred_region
          _
        $region20: #{tpu_custom_call.1} parent=11 // pred_fallthru
          _
        // Predicated region
        $region21: #{tpu_custom_call.1} parent=11 // pred_check
          %p489 = pneg %p167
        $region22: #{tpu_custom_call.1} parent=11 // pred_check_branch
          %491 = sbr.rel (%p489) target = $region24
        $region23: #{tpu_custom_call.1} parent=11 // pred_region
          _
        $region24: #{tpu_custom_call.1} parent=11 // pred_fallthru
          _
        // Predicated region
        $region25: #{tpu_custom_call.1} parent=11 // pred_check
          %p492 = pneg %p188
        $region26: #{tpu_custom_call.1} parent=11 // pred_check_branch
          %494 = sbr.rel (%p492) target = $region28
        $region27: #{tpu_custom_call.1} parent=11 // pred_region
          _
        $region28: #{tpu_custom_call.1} parent=11 // pred_fallthru
          _
        // Predicated region
        $region29: #{tpu_custom_call.1} parent=11 // pred_check
          %p495 = pneg %p209
        $region30: #{tpu_custom_call.1} parent=11 // pred_check_branch
          %497 = sbr.rel (%p495) target = $region32
        $region31: #{tpu_custom_call.1} parent=11 // pred_region
          _
        $region32: #{tpu_custom_call.1} parent=11 // pred_fallthru
          _
        // Predicated region
        $region33: #{tpu_custom_call.1} parent=11 // pred_check
          %p498 = pneg %p230
        $region34: #{tpu_custom_call.1} parent=11 // pred_check_branch
          %500 = sbr.rel (%p498) target = $region36
        $region35: #{tpu_custom_call.1} parent=11 // pred_region
          _
        $region36: #{tpu_custom_call.1} parent=11 // pred_fallthru
          _
        // Predicated region
        $region37: #{tpu_custom_call.1} parent=11 // pred_check
          %p501 = pneg %p251
        $region38: #{tpu_custom_call.1} parent=11 // pred_check_branch
          %503 = sbr.rel (%p501) target = $region40
        $region39: #{tpu_custom_call.1} parent=11 // pred_region
          _
        $region40: #{tpu_custom_call.1} parent=11 // pred_fallthru
          _
        // Predicated region
        $region41: #{tpu_custom_call.1} parent=11 // pred_check
          %p504 = pneg %p272
        $region42: #{tpu_custom_call.1} parent=11 // pred_check_branch
          %506 = sbr.rel (%p504) target = $region44
        $region43: #{tpu_custom_call.1} parent=11 // pred_region
          _
        $region44: #{tpu_custom_call.1} parent=11 // pred_fallthru
          _
        // Predicated region
        $region45: #{tpu_custom_call.1} parent=11 // pred_check
          %p507 = pneg %p293
        $region46: #{tpu_custom_call.1} parent=11 // pred_check_branch
          %509 = sbr.rel (%p507) target = $region48
        $region47: #{tpu_custom_call.1} parent=11 // pred_region
          %511 = vsyncadd [#allocation7], 0
          %s512 = sshll.u32 %s10, 4
          %s513 = int_to_ptr.hbm [resolvable:$true] %s512
          %s514 = sshll.u32 [#allocation6], 4
          %s515 = int_to_ptr.vmem [resolvable:$true] %s514
          %520 = dma.hbm_to_vmem [thread:$0]  %s513, 256, %s515, [#allocation7], 64, 64, 4
        $region48: #{tpu_custom_call.1} parent=11 // pred_fallthru
          _
        // Predicated region
        $region49: #{tpu_custom_call.1} parent=11 // pred_check
          %p521 = pneg %p314
        $region50: #{tpu_custom_call.1} parent=11 // pred_check_branch
          %523 = sbr.rel (%p521) target = $region52
        $region51: #{tpu_custom_call.1} parent=11 // pred_region
          _
        $region52: #{tpu_custom_call.1} parent=11 // pred_fallthru
          _
        // Predicated region
        $region53: #{tpu_custom_call.1} parent=11 // pred_check
          %p524 = pneg %p335
        $region54: #{tpu_custom_call.1} parent=11 // pred_check_branch
          %526 = sbr.rel (%p524) target = $region56
        $region55: #{tpu_custom_call.1} parent=11 // pred_region
          _
        $region56: #{tpu_custom_call.1} parent=11 // pred_fallthru
          _
        // Predicated region
        $region57: #{tpu_custom_call.1} parent=11 // pred_check
          %p527 = pneg %p356
        $region58: #{tpu_custom_call.1} parent=11 // pred_check_branch
          %529 = sbr.rel (%p527) target = $region60
        $region59: #{tpu_custom_call.1} parent=11 // pred_region
          _
        $region60: #{tpu_custom_call.1} parent=11 // pred_fallthru
          _
        // Predicated region
        $region61: #{tpu_custom_call.1} parent=11 // pred_check
          %p530 = pneg %p377
        $region62: #{tpu_custom_call.1} parent=11 // pred_check_branch
          %532 = sbr.rel (%p530) target = $region64
        $region63: #{tpu_custom_call.1} parent=11 // pred_region
          %534 = vsyncadd [#allocation10], 0
          %s535 = sshll.u32 %s14, 4
          %s536 = int_to_ptr.hbm [resolvable:$true] %s535
          %s537 = sshll.u32 [#allocation9], 4
          %s538 = int_to_ptr.vmem [resolvable:$true] %s537
          %543 = dma.hbm_to_vmem [thread:$0]  %s536, 256, %s538, [#allocation10], 64, 64, 4
        $region64: #{tpu_custom_call.1} parent=11 // pred_fallthru
          _
        // Predicated region
        $region65: #{tpu_custom_call.1} parent=11 // pred_check
          %p544 = pneg %p398
        $region66: #{tpu_custom_call.1} parent=11 // pred_check_branch
          %546 = sbr.rel (%p544) target = $region68
        $region67: #{tpu_custom_call.1} parent=11 // pred_region
          _
        $region68: #{tpu_custom_call.1} parent=11 // pred_fallthru
          _
        // Predicated region
        $region69: #{tpu_custom_call.1} parent=11 // pred_check
          %p547 = pneg %p419
        $region70: #{tpu_custom_call.1} parent=11 // pred_check_branch
          %549 = sbr.rel (%p547) target = $region72
        $region71: #{tpu_custom_call.1} parent=11 // pred_region
          _
        $region72: #{tpu_custom_call.1} parent=11 // pred_fallthru
          _
        // Predicated region
        $region73: #{tpu_custom_call.1} parent=11 // pred_check
          %p550 = pneg %p440
        $region74: #{tpu_custom_call.1} parent=11 // pred_check_branch
          %552 = sbr.rel (%p550) target = $region76
        $region75: #{tpu_custom_call.1} parent=11 // pred_region
          _
        $region76: #{tpu_custom_call.1} parent=11 // pred_fallthru
          _
      $region12: #{tpu_custom_call.1} parent=5 // pred_fallthru
        _
      %p553 = scmp.lt.s32.totalorder %s29, 2
      // Predicated region
      $region77: #{tpu_custom_call.1} parent=5 // pred_check
        %p554 = pneg %p553
      $region78: #{tpu_custom_call.1} parent=5 // pred_check_branch
        %556 = sbr.rel (%p554) target = $region80
      $region79: #{tpu_custom_call.1} parent=5 // pred_region
        // Predicated region
        $region81: #{tpu_custom_call.1} parent=79 // pred_check
          %p557 = pneg %p70
        $region82: #{tpu_custom_call.1} parent=79 // pred_check_branch
          %559 = sbr.rel (%p557) target = $region84
        $region83: #{tpu_custom_call.1} parent=79 // pred_region
          %p560 = scmp.lt.s32.totalorder %s36, 1
          %s561 = scalar_select %p560, %s36, 1
          %p562 = scmp.lt.s32.totalorder %s37, 0
          %s563 = scalar_select %p562, %s37, 0
          %s564 = sadd.s32 %s563, %s561
          %s565 = smul.addr %s564, 8
          %s566 = scalar_lea.vmem %s0, %s565
        $region84: #{tpu_custom_call.1} parent=79 // pred_fallthru
          _
        // Predicated region
        $region85: #{tpu_custom_call.1} parent=79 // pred_check
          %p567 = pneg %p98
        $region86: #{tpu_custom_call.1} parent=79 // pred_check_branch
          %569 = sbr.rel (%p567) target = $region88
        $region87: #{tpu_custom_call.1} parent=79 // pred_region
          %p570 = scmp.lt.s32.totalorder %s36, 1
          %s571 = scalar_select %p570, %s36, 1
          %p572 = scmp.lt.s32.totalorder %s38, 0
          %s573 = scalar_select %p572, %s38, 0
          %s574 = sadd.s32 %s573, %s571
          %s575 = smul.addr %s574, 8
          %s576 = scalar_lea.vmem %s1, %s575
        $region88: #{tpu_custom_call.1} parent=79 // pred_fallthru
          _
      $region80: #{tpu_custom_call.1} parent=5 // pred_fallthru
        _
      %p577 = scmp.le.s32.totalorder 1, %s29
      %p578 = scmp.lt.s32.totalorder %s29, 3
      %p579 = pnand %p577, %p578
      %p580 = pneg %p579
      // Predicated region
      $region89: #{tpu_custom_call.1} parent=5 // pred_check
        _
      $region90: #{tpu_custom_call.1} parent=5 // pred_check_branch
        %582 = sbr.rel (%p579) target = $region92
      $region91: #{tpu_custom_call.1} parent=5 // pred_region
        %s583 = ssub.s32 %s29, 1
        // Predicated region
        $region93: #{tpu_custom_call.1} parent=91 // pred_check
          %p584 = pneg %p293
        $region94: #{tpu_custom_call.1} parent=91 // pred_check_branch
          %586 = sbr.rel (%p584) target = $region96
        $region95: #{tpu_custom_call.1} parent=91 // pred_region
          %588 = dma.done [#allocation7], 256
        $region96: #{tpu_custom_call.1} parent=91 // pred_fallthru
          _
        // Predicated region
        $region97: #{tpu_custom_call.1} parent=91 // pred_check
          %p589 = pneg %p377
        $region98: #{tpu_custom_call.1} parent=91 // pred_check_branch
          %591 = sbr.rel (%p589) target = $region100
        $region99: #{tpu_custom_call.1} parent=91 // pred_region
          %593 = dma.done [#allocation10], 256
        $region100: #{tpu_custom_call.1} parent=91 // pred_fallthru
          _
        %p594 = scmp.lt.s32.totalorder %s39, 1
        %s595 = scalar_select %p594, %s39, 1
        %p596 = scmp.lt.s32.totalorder %s40, 0
        %s597 = scalar_select %p596, %s40, 0
        %s598 = sadd.s32 %s597, %s595
        %s599 = smul.addr %s598, 8
        %s600 = scalar_lea.vmem %s0, %s599
        %p601 = pneg %p76
        %p602 = pneg %p73
        %p603 = scmp.lt.s32.totalorder %s39, 1
        %s604 = scalar_select %p603, %s39, 1
        %p605 = scmp.lt.s32.totalorder %s41, 0
        %s606 = scalar_select %p605, %s41, 0
        %s607 = sadd.s32 %s606, %s604
        %s608 = smul.addr %s607, 8
        %s609 = scalar_lea.vmem %s1, %s608
        %p610 = pneg %p104
        %p611 = pneg %p101
        %p612 = pneg %p125
        %p613 = pneg %p122
        %p614 = pneg %p146
        %p615 = pneg %p143
        %p616 = pneg %p167
        %p617 = pneg %p164
        %p618 = pneg %p188
        %p619 = pneg %p185
        %p620 = pneg %p209
        %p621 = pneg %p206
        %p622 = pneg %p230
        %p623 = pneg %p227
        %p624 = pneg %p251
        %p625 = pneg %p248
        %p626 = pneg %p272
        %p627 = pneg %p269
        %p628 = pneg %p293
        %p629 = pneg %p290
        %p630 = pneg %p314
        %p631 = pneg %p311
        %p632 = pneg %p335
        %p633 = pneg %p332
        %p634 = pneg %p356
        %p635 = pneg %p353
        %p636 = pneg %p377
        %p637 = pneg %p374
        %p638 = pneg %p398
        %p639 = pneg %p395
        %p640 = pneg %p419
        %p641 = pneg %p416
        %p642 = pneg %p440
        %p643 = pneg %p437
        %p644 = pneg %p468
        %p645 = pneg %p465
        %s646 = sand.u32 %s455, 1
        %s647 = scalar_lea.sflag [#allocation8], %s646
        %s648 = sand.u32 %s455, 1
        %s649 = smul.addr %s648, 8
        %s650 = scalar_lea.vmem [#allocation11], %s649
        %p651 = scmp.lt.s32.totalorder %s39, 1
        %s652 = scalar_select %p651, %s39, 1
        %p653 = scmp.lt.s32.totalorder %s40, 0
        %s654 = scalar_select %p653, %s40, 0
        %s655 = sadd.s32 %s654, %s652
        %s656 = smul.addr %s655, 8
        %s657 = scalar_lea.vmem %s0, %s656
        %p658 = scmp.lt.s32.totalorder %s39, 1
        %s659 = scalar_select %p658, %s39, 1
        %p660 = scmp.lt.s32.totalorder %s41, 0
        %s661 = scalar_select %p660, %s41, 0
        %s662 = sadd.s32 %s661, %s659
        %s663 = smul.addr %s662, 8
        %s664 = scalar_lea.vmem %s1, %s663
        %v666 = vld [vmem:[%s2] sm:$0x1]
        %v667 = vld [vmem:[%s3] sm:$0x1]
        %p668 = scmp.eq.s32.totalorder %s41, 0
        // Predicated region
        $region101: #{tpu_custom_call.1} parent=91 // pred_check
          %p669 = pneg %p668
        $region102: #{tpu_custom_call.1} parent=91 // pred_check_branch
          %671 = sbr.rel (%p669) target = $region104
        $region103: #{tpu_custom_call.1} parent=91 // pred_region
          %v672 = vld [vmem:[%s657] sm:$0xff]
          %vm673 = vcmask 261120
          %v674 = vsel %vm673, %v672, 0.0
          %675 = vadd.xlane.f32.xlu0 %v674
          %v676 = vpop.xlane.xlu0 %675
          %v677 = vrcp.pop 32.0
          %v678 = vmul.f32 32.0, %v677
          %v679 = vsub.f32 1.0, %v678
          %v680 = vmul.f32 %v677, %v679
          %v681 = vadd.f32 %v677, %v680
          %vm682 = vweird.f32 %v677
          %v683 = vsel %vm682, %v677, %v681
          %v684 = vmul.f32 %v676, %v683
          %v685 = vsub.f32 %v672, %v684
          %v686 = vmul.f32 %v685, %v685
          %v687 = vsel %vm673, %v686, 0.0
          %688 = vadd.xlane.f32.xlu0 %v687
          %v689 = vpop.xlane.xlu0 %688
          %v690 = vmul.f32 %v689, %v683
          %v691 = vadd.f32 %v690, 1e-06
          %v692 = vrsqrt.pop %v691
          %v693 = vmul.f32 %v692, %v691
          %v694 = vmul.f32 %v693, %v692
          %v695 = vmul.f32 0.5, %v694
          %v696 = vsub.f32 1.5, %v695
          %v697 = vmul.f32 %v692, %v696
          %vm698 = vweird.f32 %v691
          %vm699 = vweird.f32 %v692
          %vm700 = vmor %vm698, %vm699
          %v701 = vsel %vm700, %v692, %v697
          %v702 = vmul.f32 %v685, %v701
          %v704 = vperm.slane %v666, 0
          %v706 = vmul.f32 %v702, %v704
          %v708 = vperm.slane %v667, 0
          %v710 = vadd.f32 %v706, %v708
          %v711 = vpack.c.bf16 %v710, %v710
          %v712 = vld [vmem:[%s4] sm:$0xf]
          %v713 = vld [vmem:[%s4 + $0x4] sm:$0xf]
          %v714 = vld [vmem:[%s4 + $0x8] sm:$0xf]
          %v715 = vld [vmem:[%s4 + $0xc] sm:$0xf]
          %v716 = vld [vmem:[%s5] sm:$0x1]
          %v718 = vperm.slane %v716, 0
          %v724 = vunpack.c.l.b16 %v712
          %v725 = vunpack.c.l.b16 %v713
          %v726 = vunpack.c.l.b16 %v714
          %v727 = vunpack.c.l.b16 %v715
          %v728 = vpack.c.b16 %v725, %v724
          %v729 = vpack.c.b16 %v727, %v726
          %v733 = vsel %vm673, %v711, 0
          %735 = vmatpush.bf16.msra.mxu0 0
          %736 = vmatpush.bf16.msra.mxu0 0
          %737 = vmatpush.bf16.msra.mxu0 0
          %738 = vmatpush.bf16.msra.mxu0 0
          %739 = vmatpush.bf16.msra.mxu0 0
          %740 = vmatpush.bf16.msra.mxu0 0
          %741 = vmatpush.bf16.msra.mxu0 %v729
          %742 = vmatpush.bf16.msra.mxu0 %v728
          %743 = vmatmul.bf16.gmra.mxu0 %v733
          %v744 = vpop.f32.mrf.mxu0
          %v745 = vadd.f32 %v718, %v744
          %v746 = vpop.f32.mrf.mxu0
          %747 = vdwg.mxu0
          %749 = vrot.lane.b32.xlu0 %v745, 112
          %v750 = vpop.permute.xlu0 %749
          %v752 = vpack.c.bf16 %v745, %v745
          %v753 = vpack.c.bf16 %v750, %v750
          %vm754 = vcmask 125952
          %755 = vst.msk [vmem:[#allocation2] sm:$0xf] %vm754, %v752
          %756 = vst.msk [vmem:[#allocation2 + $0x4] sm:$0xf] %vm754, %v753
          %vm757 = vcmask 7168
          %758 = vst.msk [vmem:[#allocation3] sm:$0xff] %vm757, -inf
          %759 = vst.msk [vmem:[#allocation3 + $0x8] sm:$0xff] %vm757, -inf
          %760 = vst.msk [vmem:[#allocation4] sm:$0xff] %vm757, 0.0
          %761 = vst.msk [vmem:[#allocation4 + $0x8] sm:$0xff] %vm757, 0.0
          %vm762 = vcmask 130048
          %763 = vst.msk [vmem:[#allocation5] sm:$0xff] %vm762, 0.0
          %764 = vst.msk [vmem:[#allocation5 + $0x8] sm:$0xff] %vm762, 0.0
        $region104: #{tpu_custom_call.1} parent=91 // pred_fallthru
          _
        %v765 = vld [vmem:[%s664] sm:$0xff]
        %vm766 = vcmask 261120
        %v767 = vsel %vm766, %v765, 0.0
        %768 = vadd.xlane.f32.xlu0 %v767
        %v769 = vpop.xlane.xlu0 %768
        %v770 = vrcp.pop 32.0
        %v771 = vmul.f32 32.0, %v770
        %v772 = vsub.f32 1.0, %v771
        %v773 = vmul.f32 %v770, %v772
        %v774 = vadd.f32 %v770, %v773
        %vm775 = vweird.f32 %v770
        %v776 = vsel %vm775, %v770, %v774
        %v777 = vmul.f32 %v769, %v776
        %v778 = vsub.f32 %v765, %v777
        %v779 = vmul.f32 %v778, %v778
        %v780 = vsel %vm766, %v779, 0.0
        %781 = vadd.xlane.f32.xlu0 %v780
        %v782 = vpop.xlane.xlu0 %781
        %v783 = vmul.f32 %v782, %v776
        %v784 = vadd.f32 %v783, 1e-06
        %v785 = vrsqrt.pop %v784
        %v786 = vmul.f32 %v785, %v784
        %v787 = vmul.f32 %v786, %v785
        %v788 = vmul.f32 0.5, %v787
        %v789 = vsub.f32 1.5, %v788
        %v790 = vmul.f32 %v785, %v789
        %vm791 = vweird.f32 %v784
        %vm792 = vweird.f32 %v785
        %vm793 = vmor %vm791, %vm792
        %v794 = vsel %vm793, %v785, %v790
        %v795 = vmul.f32 %v778, %v794
        %v797 = vperm.slane %v666, 0
        %v799 = vmul.f32 %v795, %v797
        %v801 = vperm.slane %v667, 0
        %v803 = vadd.f32 %v799, %v801
        %v804 = vpack.c.bf16 %v803, %v803
        %v805 = vld [vmem:[%s6] sm:$0xf]
        %v806 = vld [vmem:[%s6 + $0x4] sm:$0xf]
        %v807 = vld [vmem:[%s6 + $0x8] sm:$0xf]
        %v808 = vld [vmem:[%s6 + $0xc] sm:$0xf]
        %v809 = vld [vmem:[%s7] sm:$0x1]
        %v811 = vperm.slane %v809, 0
        %v817 = vunpack.c.l.b16 %v805
        %v818 = vunpack.c.l.b16 %v806
        %v819 = vunpack.c.l.b16 %v807
        %v820 = vunpack.c.l.b16 %v808
        %v821 = vpack.c.b16 %v818, %v817
        %v822 = vpack.c.b16 %v820, %v819
        %v826 = vsel %vm766, %v804, 0
        %828 = vmatpush.bf16.msra.mxu0 0
        %829 = vmatpush.bf16.msra.mxu0 0
        %830 = vmatpush.bf16.msra.mxu0 0
        %831 = vmatpush.bf16.msra.mxu0 0
        %832 = vmatpush.bf16.msra.mxu0 0
        %833 = vmatpush.bf16.msra.mxu0 0
        %834 = vmatpush.bf16.msra.mxu0 %v822
        %835 = vmatpush.bf16.msra.mxu0 %v821
        %836 = vmatmul.bf16.gmra.mxu0 %v826
        %v837 = vpop.f32.mrf.mxu0
        %v838 = vadd.f32 %v811, %v837
        %v839 = vpop.f32.mrf.mxu0
        %840 = vdwg.mxu0
        %v841 = vld [vmem:[%s8] sm:$0xf]
        %v842 = vld [vmem:[%s8 + $0x4] sm:$0xf]
        %v843 = vld [vmem:[%s8 + $0x8] sm:$0xf]
        %v844 = vld [vmem:[%s8 + $0xc] sm:$0xf]
        %v845 = vld [vmem:[%s9] sm:$0x1]
        %v847 = vperm.slane %v845, 0
        %v853 = vunpack.c.l.b16 %v841
        %v854 = vunpack.c.l.b16 %v842
        %v855 = vunpack.c.l.b16 %v843
        %v856 = vunpack.c.l.b16 %v844
        %v857 = vpack.c.b16 %v854, %v853
        %v858 = vpack.c.b16 %v856, %v855
        %861 = vmatpush.bf16.msra.mxu0 0
        %862 = vmatpush.bf16.msra.mxu0 0
        %863 = vmatpush.bf16.msra.mxu0 0
        %864 = vmatpush.bf16.msra.mxu0 0
        %865 = vmatpush.bf16.msra.mxu0 0
        %866 = vmatpush.bf16.msra.mxu0 0
        %867 = vmatpush.bf16.msra.mxu0 %v858
        %868 = vmatpush.bf16.msra.mxu0 %v857
        %869 = vmatmul.bf16.gmra.mxu0 %v826
        %v870 = vpop.f32.mrf.mxu0
        %v871 = vadd.f32 %v847, %v870
        %v872 = vpop.f32.mrf.mxu0
        %873 = vdwg.mxu0
        %875 = vrot.lane.b32.xlu0 %v838, 112
        %v876 = vpop.permute.xlu0 %875
        %v878 = vpack.c.bf16 %v838, %v838
        %v879 = vpack.c.bf16 %v876, %v876
        %881 = vrot.lane.b32.xlu0 %v871, 112
        %v882 = vpop.permute.xlu0 %881
        %v884 = vpack.c.bf16 %v871, %v871
        %v885 = vpack.c.bf16 %v882, %v882
        %v886 = vld [vmem:[#allocation2] sm:$0xf]
        %v887 = vld [vmem:[#allocation2 + $0x4] sm:$0xf]
        %vm888 = vcmask 130048
        %v890 = vsel %vm888, %v886, 0
        %v893 = vsel %vm888, %v878, 0
        %895 = vmatpush.bf16.xpose.msra.mxu0 0
        %896 = vmatpush.bf16.xpose.msra.mxu0 0
        %897 = vmatpush.bf16.xpose.msra.mxu0 0
        %898 = vmatpush.bf16.xpose.msra.mxu0 0
        %899 = vmatpush.bf16.xpose.msra.mxu0 0
        %900 = vmatpush.bf16.xpose.msra.mxu0 0
        %901 = vmatpush.bf16.xpose.msra.mxu0 0
        %902 = vmatpush.bf16.xpose.msra.mxu0 %v893
        %903 = vmatmul.bf16.gmra.mxu0 %v890
        %v904 = vpop.f32.mrf.mxu0
        %v905 = vadd.f32 0.0, %v904
        %v906 = vpop.f32.mrf.mxu0
        %907 = vdwg.mxu0
        %v909 = vsel %vm888, %v887, 0
        %v912 = vsel %vm888, %v879, 0
        %914 = vmatpush.bf16.xpose.msra.mxu0 0
        %915 = vmatpush.bf16.xpose.msra.mxu0 0
        %916 = vmatpush.bf16.xpose.msra.mxu0 0
        %917 = vmatpush.bf16.xpose.msra.mxu0 0
        %918 = vmatpush.bf16.xpose.msra.mxu0 0
        %919 = vmatpush.bf16.xpose.msra.mxu0 0
        %920 = vmatpush.bf16.xpose.msra.mxu0 0
        %921 = vmatpush.bf16.xpose.msra.mxu0 %v912
        %922 = vmatmul.bf16.gmra.mxu0 %v909
        %v923 = vpop.f32.mrf.mxu0
        %v924 = vadd.f32 0.0, %v923
        %v925 = vpop.f32.mrf.mxu0
        %926 = vdwg.mxu0
        %v927 = vld [vmem:[#allocation3] sm:$0xff]
        %v928 = vld [vmem:[#allocation3 + $0x8] sm:$0xff]
        %vm929 = vcmask 64512
        %v930 = vsel %vm929, %v905, -inf
        %931 = vmax.xlane.f32.xlu0 %v930
        %v932 = vpop.xlane.xlu0 %931
        %v933 = vsel %vm929, %v924, -inf
        %934 = vmax.xlane.f32.xlu0 %v933
        %v935 = vpop.xlane.xlu0 %934
        %v936 = vmax.f32 %v927, %v932
        %v937 = vmax.f32 %v928, %v935
        %v938 = vsub.f32 %v927, %v936
        %v939 = vsub.f32 %v928, %v937
        %v940 = vmul.f32 %v938, 1.442695
        %v941 = vpow.pop %v940
        %v942 = vmul.f32 %v939, 1.442695
        %v943 = vpow.pop %v942
        %945 = vset.pattern.permute.xlu0 0
        %946 = vperm.xlu0 %945, %v936
        %v947 = vpop.permute.xlu0 %946
        %950 = vset.pattern.permute.xlu0 0
        %951 = vperm.xlu0 %950, %v937
        %v952 = vpop.permute.xlu0 %951
        %v954 = vsub.f32 %v905, %v947
        %v955 = vsub.f32 %v924, %v952
        %v956 = vmul.f32 %v954, 1.442695
        %v957 = vpow.pop %v956
        %v958 = vmul.f32 %v955, 1.442695
        %v959 = vpow.pop %v958
        %v960 = vld [vmem:[#allocation4] sm:$0xff]
        %v961 = vld [vmem:[#allocation4 + $0x8] sm:$0xff]
        %v962 = vmul.f32 %v941, %v960
        %v963 = vmul.f32 %v943, %v961
        %v964 = vsel %vm929, %v957, 0.0
        %965 = vadd.xlane.f32.xlu0 %v964
        %v966 = vpop.xlane.xlu0 %965
        %v967 = vsel %vm929, %v959, 0.0
        %968 = vadd.xlane.f32.xlu0 %v967
        %v969 = vpop.xlane.xlu0 %968
        %v970 = vadd.f32 %v962, %v966
        %v971 = vadd.f32 %v963, %v969
        %vm972 = vcmask 7168
        %973 = vst.msk [vmem:[#allocation4] sm:$0xff] %vm972, %v970
        %974 = vst.msk [vmem:[#allocation4 + $0x8] sm:$0xff] %vm972, %v971
        %v975 = vld [vmem:[#allocation5] sm:$0xff]
        %v976 = vld [vmem:[#allocation5 + $0x8] sm:$0xff]
        %978 = vset.pattern.permute.xlu0 0
        %979 = vperm.xlu0 %978, %v941
        %v980 = vpop.permute.xlu0 %979
        %983 = vset.pattern.permute.xlu0 0
        %984 = vperm.xlu0 %983, %v943
        %v985 = vpop.permute.xlu0 %984
        %v987 = vmul.f32 %v980, %v975
        %v988 = vmul.f32 %v985, %v976
        %v989 = vpack.c.bf16 %v957, %v957
        %v990 = vpack.c.bf16 %v959, %v959
        %v992 = vsel %vm929, %v989, 0
        %vm994 = vcmask 1043456
        %v996 = vsel %vm994, %v884, 0
        %998 = vmatpush.bf16.msra.mxu0 0
        %999 = vmatpush.bf16.msra.mxu0 0
        %1000 = vmatpush.bf16.msra.mxu0 0
        %1001 = vmatpush.bf16.msra.mxu0 0
        %1002 = vmatpush.bf16.msra.mxu0 0
        %1003 = vmatpush.bf16.msra.mxu0 0
        %1004 = vmatpush.bf16.msra.mxu0 0
        %1005 = vmatpush.bf16.msra.mxu0 %v996
        %1006 = vmatmul.bf16.gmra.mxu0 %v992
        %v1007 = vpop.f32.mrf.mxu0
        %v1008 = vadd.f32 0.0, %v1007
        %v1009 = vpop.f32.mrf.mxu0
        %1010 = vdwg.mxu0
        %v1012 = vsel %vm929, %v990, 0
        %v1015 = vsel %vm994, %v885, 0
        %1017 = vmatpush.bf16.msra.mxu0 0
        %1018 = vmatpush.bf16.msra.mxu0 0
        %1019 = vmatpush.bf16.msra.mxu0 0
        %1020 = vmatpush.bf16.msra.mxu0 0
        %1021 = vmatpush.bf16.msra.mxu0 0
        %1022 = vmatpush.bf16.msra.mxu0 0
        %1023 = vmatpush.bf16.msra.mxu0 0
        %1024 = vmatpush.bf16.msra.mxu0 %v1015
        %1025 = vmatmul.bf16.gmra.mxu0 %v1012
        %v1026 = vpop.f32.mrf.mxu0
        %v1027 = vadd.f32 0.0, %v1026
        %v1028 = vpop.f32.mrf.mxu0
        %1029 = vdwg.mxu0
        %v1030 = vadd.f32 %v987, %v1008
        %v1031 = vadd.f32 %v988, %v1027
        %1032 = vst.msk [vmem:[#allocation5] sm:$0xff] %vm888, %v1030
        %1033 = vst.msk [vmem:[#allocation5 + $0x8] sm:$0xff] %vm888, %v1031
        %1034 = vst.msk [vmem:[#allocation3] sm:$0xff] %vm972, %v936
        %1035 = vst.msk [vmem:[#allocation3 + $0x8] sm:$0xff] %vm972, %v937
        // Predicated region
        $region105: #{tpu_custom_call.1} parent=91 // pred_check
          %p1036 = pneg %p668
        $region106: #{tpu_custom_call.1} parent=91 // pred_check_branch
          %1038 = sbr.rel (%p1036) target = $region108
        $region107: #{tpu_custom_call.1} parent=91 // pred_region
          %v1039 = vld [vmem:[#allocation4] sm:$0xff]
          %v1040 = vld [vmem:[#allocation4 + $0x8] sm:$0xff]
          %v1041 = vrcp.pop %v1039
          %v1042 = vrcp.pop %v1040
          %v1043 = vld [vmem:[#allocation5] sm:$0xff]
          %v1044 = vld [vmem:[#allocation5 + $0x8] sm:$0xff]
          %1046 = vset.pattern.permute.xlu0 0
          %1047 = vperm.xlu0 %1046, %v1041
          %v1048 = vpop.permute.xlu0 %1047
          %1051 = vset.pattern.permute.xlu0 0
          %1052 = vperm.xlu0 %1051, %v1042
          %v1053 = vpop.permute.xlu0 %1052
          %v1055 = vmul.f32 %v1043, %v1048
          %v1056 = vmul.f32 %v1044, %v1053
          %1058 = vrot.lane.b32.xlu0 %v1056, 16
          %v1059 = vpop.permute.xlu0 %1058
          %v1061 = vsel %vm888, %v1055, %v1059
          %v1062 = vpack.c.bf16 %v1061, %v1061
          %v1063 = vld [vmem:[#allocation6] sm:$0xf]
          %v1064 = vld [vmem:[#allocation6 + $0x4] sm:$0xf]
          %v1065 = vld [vmem:[#allocation6 + $0x8] sm:$0xf]
          %v1066 = vld [vmem:[#allocation6 + $0xc] sm:$0xf]
          %v1067 = vld [vmem:[%s11] sm:$0x1]
          %v1069 = vperm.slane %v1067, 0
          %v1075 = vunpack.c.l.b16 %v1063
          %v1076 = vunpack.c.l.b16 %v1064
          %v1077 = vunpack.c.l.b16 %v1065
          %v1078 = vunpack.c.l.b16 %v1066
          %v1079 = vpack.c.b16 %v1076, %v1075
          %v1080 = vpack.c.b16 %v1078, %v1077
          %v1084 = vsel %vm766, %v1062, 0
          %1086 = vmatpush.bf16.msra.mxu0 0
          %1087 = vmatpush.bf16.msra.mxu0 0
          %1088 = vmatpush.bf16.msra.mxu0 0
          %1089 = vmatpush.bf16.msra.mxu0 0
          %1090 = vmatpush.bf16.msra.mxu0 0
          %1091 = vmatpush.bf16.msra.mxu0 0
          %1092 = vmatpush.bf16.msra.mxu0 %v1080
          %1093 = vmatpush.bf16.msra.mxu0 %v1079
          %1094 = vmatmul.bf16.gmra.mxu0 %v1084
          %v1095 = vpop.f32.mrf.mxu0
          %v1096 = vadd.f32 %v1069, %v1095
          %v1097 = vpop.f32.mrf.mxu0
          %1098 = vdwg.mxu0
          %v1099 = vld [vmem:[%s657] sm:$0xff]
          %v1100 = vadd.f32 %v1099, %v1096
          %v1101 = vld [vmem:[%s12] sm:$0x1]
          %v1102 = vld [vmem:[%s13] sm:$0x1]
          %v1103 = vsel %vm766, %v1100, 0.0
          %1104 = vadd.xlane.f32.xlu0 %v1103
          %v1105 = vpop.xlane.xlu0 %1104
          %v1106 = vmul.f32 %v1105, %v776
          %v1107 = vsub.f32 %v1100, %v1106
          %v1108 = vmul.f32 %v1107, %v1107
          %v1109 = vsel %vm766, %v1108, 0.0
          %1110 = vadd.xlane.f32.xlu0 %v1109
          %v1111 = vpop.xlane.xlu0 %1110
          %v1112 = vmul.f32 %v1111, %v776
          %v1113 = vadd.f32 %v1112, 1e-06
          %v1114 = vrsqrt.pop %v1113
          %v1115 = vmul.f32 %v1114, %v1113
          %v1116 = vmul.f32 %v1115, %v1114
          %v1117 = vmul.f32 0.5, %v1116
          %v1118 = vsub.f32 1.5, %v1117
          %v1119 = vmul.f32 %v1114, %v1118
          %vm1120 = vweird.f32 %v1113
          %vm1121 = vweird.f32 %v1114
          %vm1122 = vmor %vm1120, %vm1121
          %v1123 = vsel %vm1122, %v1114, %v1119
          %v1124 = vmul.f32 %v1107, %v1123
          %v1126 = vperm.slane %v1101, 0
          %v1128 = vmul.f32 %v1124, %v1126
          %v1130 = vperm.slane %v1102, 0
          %v1132 = vadd.f32 %v1128, %v1130
          %v1133 = vpack.c.bf16 %v1132, %v1132
          %v1134 = vld [vmem:[#allocation9] sm:$0xf]
          %v1135 = vld [vmem:[#allocation9 + $0x4] sm:$0xf]
          %v1136 = vld [vmem:[#allocation9 + $0x8] sm:$0xf]
          %v1137 = vld [vmem:[#allocation9 + $0xc] sm:$0xf]
          %v1138 = vld [vmem:[%s15] sm:$0x1]
          %v1140 = vperm.slane %v1138, 0
          %v1146 = vunpack.c.l.b16 %v1134
          %v1147 = vunpack.c.l.b16 %v1135
          %v1148 = vunpack.c.l.b16 %v1136
          %v1149 = vunpack.c.l.b16 %v1137
          %v1150 = vpack.c.b16 %v1147, %v1146
          %v1151 = vpack.c.b16 %v1149, %v1148
          %v1155 = vsel %vm766, %v1133, 0
          %1157 = vmatpush.bf16.msra.mxu0 0
          %1158 = vmatpush.bf16.msra.mxu0 0
          %1159 = vmatpush.bf16.msra.mxu0 0
          %1160 = vmatpush.bf16.msra.mxu0 0
          %1161 = vmatpush.bf16.msra.mxu0 0
          %1162 = vmatpush.bf16.msra.mxu0 0
          %1163 = vmatpush.bf16.msra.mxu0 %v1151
          %1164 = vmatpush.bf16.msra.mxu0 %v1150
          %1165 = vmatmul.bf16.gmra.mxu0 %v1155
          %v1166 = vpop.f32.mrf.mxu0
          %v1167 = vadd.f32 %v1140, %v1166
          %v1168 = vpop.f32.mrf.mxu0
          %1169 = vdwg.mxu0
          %v1170 = vmul.f32 %v1167, 0.5
          %v1171 = vmul.f32 %v1167, 0.044715
          %v1172 = vmul.f32 %v1171, %v1167
          %v1173 = vmul.f32 %v1172, %v1167
          %v1174 = vadd.f32 %v1167, %v1173
          %v1175 = vmul.f32 %v1174, 0.7978846
          %v1176 = vtanh.pop %v1175
          %v1177 = vadd.f32 %v1176, 1.0
          %v1178 = vmul.f32 %v1170, %v1177
          %v1179 = vpack.c.bf16 %v1178, %v1178
          %v1180 = vld [vmem:[%s16] sm:$0xf]
          %v1181 = vld [vmem:[%s16 + $0x4] sm:$0xf]
          %v1182 = vld [vmem:[%s16 + $0x8] sm:$0xf]
          %v1183 = vld [vmem:[%s16 + $0xc] sm:$0xf]
          %v1184 = vld [vmem:[%s16 + $0x10] sm:$0xf]
          %v1185 = vld [vmem:[%s16 + $0x14] sm:$0xf]
          %v1186 = vld [vmem:[%s16 + $0x18] sm:$0xf]
          %v1187 = vld [vmem:[%s16 + $0x1c] sm:$0xf]
          %v1188 = vld [vmem:[%s16 + $0x20] sm:$0xf]
          %v1189 = vld [vmem:[%s16 + $0x24] sm:$0xf]
          %v1190 = vld [vmem:[%s16 + $0x28] sm:$0xf]
          %v1191 = vld [vmem:[%s16 + $0x2c] sm:$0xf]
          %v1192 = vld [vmem:[%s16 + $0x30] sm:$0xf]
          %v1193 = vld [vmem:[%s16 + $0x34] sm:$0xf]
          %v1194 = vld [vmem:[%s16 + $0x38] sm:$0xf]
          %v1195 = vld [vmem:[%s16 + $0x3c] sm:$0xf]
          %v1196 = vld [vmem:[%s17] sm:$0x1]
          %v1198 = vperm.slane %v1196, 0
          %v1216 = vunpack.c.l.b16 %v1180
          %v1217 = vunpack.c.l.b16 %v1181
          %v1218 = vunpack.c.l.b16 %v1182
          %v1219 = vunpack.c.l.b16 %v1183
          %v1220 = vunpack.c.l.b16 %v1184
          %v1221 = vunpack.c.l.b16 %v1185
          %v1222 = vunpack.c.l.b16 %v1186
          %v1223 = vunpack.c.l.b16 %v1187
          %v1224 = vunpack.c.l.b16 %v1188
          %v1225 = vunpack.c.l.b16 %v1189
          %v1226 = vunpack.c.l.b16 %v1190
          %v1227 = vunpack.c.l.b16 %v1191
          %v1228 = vunpack.c.l.b16 %v1192
          %v1229 = vunpack.c.l.b16 %v1193
          %v1230 = vunpack.c.l.b16 %v1194
          %v1231 = vunpack.c.l.b16 %v1195
          %v1232 = vpack.c.b16 %v1217, %v1216
          %v1233 = vpack.c.b16 %v1219, %v1218
          %v1234 = vpack.c.b16 %v1221, %v1220
          %v1235 = vpack.c.b16 %v1223, %v1222
          %v1236 = vpack.c.b16 %v1225, %v1224
          %v1237 = vpack.c.b16 %v1227, %v1226
          %v1238 = vpack.c.b16 %v1229, %v1228
          %v1239 = vpack.c.b16 %v1231, %v1230
          %1248 = vmatpush.bf16.msra.mxu0 %v1239
          %1249 = vmatpush.bf16.msra.mxu0 %v1238
          %1250 = vmatpush.bf16.msra.mxu0 %v1237
          %1251 = vmatpush.bf16.msra.mxu0 %v1236
          %1252 = vmatpush.bf16.msra.mxu0 %v1235
          %1253 = vmatpush.bf16.msra.mxu0 %v1234
          %1254 = vmatpush.bf16.msra.mxu0 %v1233
          %1255 = vmatpush.bf16.msra.mxu0 %v1232
          %1256 = vmatmul.bf16.gmra.mxu0 %v1179
          %v1257 = vpop.f32.mrf.mxu0
          %v1258 = vadd.f32 %v1198, %v1257
          %v1259 = vpop.f32.mrf.mxu0
          %1260 = vdwg.mxu0
          %v1261 = vadd.f32 %v1100, %v1258
          %1262 = vst.msk [vmem:[%s650] sm:$0xff] %vm766, %v1261
        $region108: #{tpu_custom_call.1} parent=91 // pred_fallthru
          _
        %s1263 = sand.u32 %s455, 1
        %s1264 = scalar_lea.sflag [#allocation8], %s1263
        %s1265 = sand.u32 %s455, 1
        %s1266 = smul.addr %s1265, 8
        %s1267 = scalar_lea.vmem [#allocation11], %s1266
        // Predicated region
        $region109: #{tpu_custom_call.1} parent=91 // pred_check
          %p1268 = pneg %p465
        $region110: #{tpu_custom_call.1} parent=91 // pred_check_branch
          %1270 = sbr.rel (%p1268) target = $region112
        $region111: #{tpu_custom_call.1} parent=91 // pred_region
          %1272 = vsyncadd %s1264, 0
          %s1273 = sadd.s32 %s40, %s39
          %s1274 = smul.addr %s1273, 8
          %s1275 = scalar_lea.hbm %s18, %s1274
          %s1277 = sshll.u32 %s1267, 4
          %s1278 = int_to_ptr.vmem [resolvable:$true] %s1277
          %s1279 = sshll.u32 %s1275, 4
          %s1280 = int_to_ptr.hbm [resolvable:$true] %s1279
          %1282 = dma.vmem_to_hbm [thread:$0]  %s1278, 128, %s1280, %s1264
        $region112: #{tpu_custom_call.1} parent=91 // pred_fallthru
          _
      $region92: #{tpu_custom_call.1} parent=5 // pred_fallthru
        _
      %p1283 = scmp.le.s32.totalorder 2, %s29
      // Predicated region
      $region113: #{tpu_custom_call.1} parent=5 // pred_check
        %p1284 = pneg %p1283
      $region114: #{tpu_custom_call.1} parent=5 // pred_check_branch
        %1286 = sbr.rel (%p1284) target = $region116
      $region115: #{tpu_custom_call.1} parent=5 // pred_region
        %s1287 = ssub.s32 %s29, 2
        // Predicated region
        $region117: #{tpu_custom_call.1} parent=115 // pred_check
          %p1288 = pneg %p471
        $region118: #{tpu_custom_call.1} parent=115 // pred_check_branch
          %1290 = sbr.rel (%p1288) target = $region120
        $region119: #{tpu_custom_call.1} parent=115 // pred_region
          %s1291 = sand.u32 %s456, 1
          %s1292 = scalar_lea.sflag [#allocation8], %s1291
          %s1293 = sand.u32 %s456, 1
          %s1294 = smul.addr %s1293, 8
          %s1295 = scalar_lea.vmem [#allocation11], %s1294
          %1297 = dma.done %s1292, 128
        $region120: #{tpu_custom_call.1} parent=115 // pred_fallthru
          _
      $region116: #{tpu_custom_call.1} parent=5 // pred_fallthru
        _
    $region6: #{tpu_custom_call.1} parent=1 // loop_footer
      %s33 = sadd.s32 1, %s29
    $region7: #{tpu_custom_call.1} parent=1 // loop_footer_branch
      %28 = sbr.rel target = $region3
    $region8: #{tpu_custom_call.1} parent=1 // loop_exit
      _
    %1298 = vsyncpa [#allocation7], 1
    %s1299 = scalar_lea.sflag [#allocation7], 1
    %1300 = vsyncpa %s1299, 1
    %1301 = vsyncpa [#allocation10], 1
    %1302 = vsyncpa [#allocation8], 1
    %s1303 = scalar_lea.sflag [#allocation8], 1
    %1304 = vsyncpa %s1303, 1

</llo_original>
